<compile_context>
chip_gen: v6e
topology: v6e:2x2x1
jax: 0.10.0
libtpu: 0.0.40
codegen_flags: <defaults>
</compile_context>

<pallas_src>
import functools

import jax
import jax.numpy as jnp
from jax import lax
from jax.experimental import pallas as pl
from jax.experimental.pallas import tpu as pltpu


def example_net_kernel(sent_ref, emb_ref, wih0_ref, wih1_ref, w1_ref, w2_ref,
                       bias_ref, o_ref, x_scratch, *, label_count):
    S, Lp = o_ref.shape
    _, Din = x_scratch.shape
    EB = emb_ref.shape[2]            # embedding row width (= embedding_dim * batch)
    E = Din // EB                    # tokens per sentence row
    H = wih1_ref.shape[0]            # hidden_dim

    # ---- embedding gather: indices in SMEM (scalar prefetch), table in VMEM ----
    for s in range(S):
        for e in range(E):
            tok = sent_ref[s, e]                                   # SMEM scalar
            x_scratch[s:s + 1, e * EB:(e + 1) * EB] = emb_ref[tok]  # (1, EB)
    x = x_scratch[...]                                             # (S, Din)

    # packed biases: row0=b_lstm0, row1=b_lstm1, row2=b_linear1, row3=b_hidden2tag
    b0 = bias_ref[0:1, 0:4 * H]
    b1 = bias_ref[1:2, 0:4 * H]
    bl1 = bias_ref[2:3, 0:4 * H]
    bl2 = bias_ref[3:4, 0:Lp]

    def lstm_cell(inp, w_t, b):
        # Single timestep with zero (h0, c0): c = i*g, h = o*tanh(c).
        # Gate columns were reordered at init to [i | g | o | f].
        g = jnp.dot(inp, w_t, preferred_element_type=jnp.float32) + b
        i_g = jax.nn.sigmoid(g[:, 0:H])
        g_g = jnp.tanh(g[:, H:2 * H])
        o_g = jax.nn.sigmoid(g[:, 2 * H:3 * H])
        return o_g * jnp.tanh(i_g * g_g)

    h0 = lstm_cell(x, wih0_ref[...], b0)                 # (S, H)
    h1 = lstm_cell(h0, wih1_ref[...], b1)                # (S, H)  == lstm_out

    # linear1 + ReLU
    out = jnp.dot(h1, w1_ref[...], preferred_element_type=jnp.float32) + bl1
    out = jnp.maximum(out, 0.0)                          # (S, 4H)

    # hidden2tag + ReLU (lane-padded to Lp)
    tag = jnp.dot(out, w2_ref[...], preferred_element_type=jnp.float32) + bl2
    tag = jnp.maximum(tag, 0.0)                          # (S, Lp)

    # masked log_softmax over the first `label_count` lanes
    lane = lax.broadcasted_iota(jnp.int32, (S, Lp), 1)
    tag = jnp.where(lane < label_count, tag, jnp.float32(-1e30))
    m = jnp.max(tag, axis=1, keepdims=True)
    z = tag - m
    lse = jnp.log(jnp.sum(jnp.exp(z), axis=1, keepdims=True))
    o_ref[...] = z - lse


def prepare_params(params, lane_pad=128):
    """One-time preprocessing: transpose weights, fold LSTM biases, reorder gates,
    pad the tag head / output to a lane-dense width, pack biases into one array."""
    H = params["w_ih_l1"].shape[1]
    fourH = 4 * H
    L = params["hidden2tag_w"].shape[0]
    Lp = lane_pad
    W = max(fourH, Lp)

    # PyTorch gate order [i|f|g|o] -> [i|g|o|f] (live gates contiguous in [0:3H]).
    perm = jnp.concatenate([jnp.arange(0, H), jnp.arange(2 * H, 3 * H),
                            jnp.arange(3 * H, 4 * H), jnp.arange(H, 2 * H)])

    def pad_row(v):
        v = v.astype(jnp.float32)
        return jnp.zeros((W,), jnp.float32).at[:v.shape[0]].set(v)

    wih0_t = params["w_ih_l0"].T[:, perm].astype(jnp.float32)          # (Din, 4H)
    wih1_t = params["w_ih_l1"].T[:, perm].astype(jnp.float32)          # (H,   4H)
    w1_t = params["linear1_w"].T.astype(jnp.float32)                   # (H,   4H)
    w2_tp = jnp.zeros((fourH, Lp), jnp.float32).at[:, :L].set(
        params["hidden2tag_w"].T.astype(jnp.float32))                  # (4H,  Lp)

    b0 = (params["b_ih_l0"] + params["b_hh_l0"])[perm]
    b1 = (params["b_ih_l1"] + params["b_hh_l1"])[perm]
    bias_pack = jnp.stack(
        [pad_row(b0), pad_row(b1),
         pad_row(params["linear1_b"]), pad_row(params["hidden2tag_b"])],
        axis=0)                                                        # (4, W)

    emb3 = params["embedding"].astype(jnp.float32)[:, None, :]         # (V, 1, EB)

    args = (emb3, wih0_t, wih1_t, w1_t, w2_tp, bias_pack)
    return args, L


@functools.partial(jax.jit, static_argnames=("label_count",))
def example_net_forward(sentence, args, label_count):
    emb3, wih0_t, wih1_t, w1_t, w2_tp, bias_pack = args
    S = sentence.shape[0]
    Din = wih0_t.shape[0]
    Lp = w2_tp.shape[1]

    def full_spec(a):
        nd = a.ndim
        return pl.BlockSpec(a.shape, lambda i, sent: (0,) * nd)

    grid_spec = pltpu.PrefetchScalarGridSpec(
        num_scalar_prefetch=1,                     # `sentence` -> SMEM
        grid=(1,),
        in_specs=[full_spec(a) for a in args],
        out_specs=pl.BlockSpec((S, Lp), lambda i, sent: (0, 0)),
        scratch_shapes=[pltpu.VMEM((S, Din), jnp.float32)],
    )

    out = pl.pallas_call(
        functools.partial(example_net_kernel, label_count=label_count),
        out_shape=jax.ShapeDtypeStruct((S, Lp), jnp.float32),
        grid_spec=grid_spec,
        compiler_params=pltpu.CompilerParams(dimension_semantics=("arbitrary",)),
    )(sentence, *args)
    return out[:, :label_count]


def reference_forward(sentence, params):
    # Pure-JAX reference mirroring the PyTorch forward, for correctness check.
    H = params["w_ih_l1"].shape[1]
    emb = params["embedding"][sentence]
    S = sentence.shape[0]
    x = emb.reshape(S, -1).astype(jnp.float32)

    def cell(inp, w, b_ih, b_hh):
        g = inp @ w.T + b_ih + b_hh
        i = jax.nn.sigmoid(g[:, :H])
        gg = jnp.tanh(g[:, 2 * H:3 * H])
        o = jax.nn.sigmoid(g[:, 3 * H:])
        return o * jnp.tanh(i * gg)

    h0 = cell(x, params["w_ih_l0"], params["b_ih_l0"], params["b_hh_l0"])
    h1 = cell(h0, params["w_ih_l1"], params["b_ih_l1"], params["b_hh_l1"])
    out = jax.nn.relu(h1 @ params["linear1_w"].T + params["linear1_b"])
    tag = jax.nn.relu(out @ params["hidden2tag_w"].T + params["hidden2tag_b"])
    return jax.nn.log_softmax(tag, axis=1)


if __name__ == "__main__":
    # Small shapes consistent with the module:
    B, E, H, V, L = 2, 4, 32, 50, 8     # batch_size, embedding_dim, hidden_dim, vocab, labels
    S = 8                               # sentence length
    Din = B * E * E                     # LSTM input size = batch_size * embedding_dim**2

    key = jax.random.PRNGKey(0)
    keys = jax.random.split(key, 12)
    sH = H ** -0.5
    s4H = (4 * H) ** -0.5

    def u(k, shape, scale):
        return jax.random.uniform(k, shape, jnp.float32, -scale, scale)

    params = {
        "embedding": jax.random.normal(keys[0], (V, E * B), jnp.float32),
        "w_ih_l0": u(keys[1], (4 * H, Din), sH),
        "b_ih_l0": u(keys[2], (4 * H,), sH),
        "b_hh_l0": u(keys[3], (4 * H,), sH),
        "w_ih_l1": u(keys[4], (4 * H, H), sH),
        "b_ih_l1": u(keys[5], (4 * H,), sH),
        "b_hh_l1": u(keys[6], (4 * H,), sH),
        "linear1_w": u(keys[7], (4 * H, H), sH),
        "linear1_b": u(keys[8], (4 * H,), sH),
        "hidden2tag_w": u(keys[9], (L, 4 * H), s4H),
        "hidden2tag_b": u(keys[10], (L,), s4H),
    }
    # sentence: (S, embedding_dim) integer token indices, as implied by the view/LSTM shapes.
    sentence = jax.random.randint(keys[11], (S, E), 0, V, dtype=jnp.int32)

    # One-time parameter preprocessing (hoisted out of the hot path).
    prepped, label_count = prepare_params(params)

    out = example_net_forward(sentence, prepped, label_count=label_count)
    jax.block_until_ready(out)
    assert out.shape == (S, L)

    ref = reference_forward(sentence, params)
    assert jnp.allclose(out, ref, atol=1e-5, rtol=1e-5), "kernel/reference mismatch"

    print("KERNEL_OK")
</pallas_src>

<mosaic_0001>
module attributes {stable_mosaic.version = 11 : i64} {
  func.func @example_net_kernel(%arg0: i32, %arg1: memref<8x4xi32, #tpu.memory_space<smem>>, %arg2: memref<50x1x8xf32, #tpu.memory_space<vmem>>, %arg3: memref<32x128xf32, #tpu.memory_space<vmem>>, %arg4: memref<32x128xf32, #tpu.memory_space<vmem>>, %arg5: memref<32x128xf32, #tpu.memory_space<vmem>>, %arg6: memref<128x128xf32, #tpu.memory_space<vmem>>, %arg7: memref<4x128xf32, #tpu.memory_space<vmem>>, %arg8: memref<8x128xf32, #tpu.memory_space<vmem>>, %arg9: memref<8x32xf32, #tpu.memory_space<vmem>>) attributes {dimension_semantics = [#tpu.dimension_semantics<arbitrary>], iteration_bounds = array<i64: 1>, scalar_prefetch = 1 : i64, scratch_operands = 1 : i64, tpu.core_type = #tpu.core_type<tc>, window_params = [{pipeline_mode = #tpu.pipeline_mode<synchronous>, transform_indices = @transform_0, window_bounds = array<i64: 50, 1, 8>}, {pipeline_mode = #tpu.pipeline_mode<synchronous>, transform_indices = @transform_1, window_bounds = array<i64: 32, 128>}, {pipeline_mode = #tpu.pipeline_mode<synchronous>, transform_indices = @transform_2, window_bounds = array<i64: 32, 128>}, {pipeline_mode = #tpu.pipeline_mode<synchronous>, transform_indices = @transform_3, window_bounds = array<i64: 32, 128>}, {pipeline_mode = #tpu.pipeline_mode<synchronous>, transform_indices = @transform_4, window_bounds = array<i64: 128, 128>}, {pipeline_mode = #tpu.pipeline_mode<synchronous>, transform_indices = @transform_5, window_bounds = array<i64: 4, 128>}, {pipeline_mode = #tpu.pipeline_mode<synchronous>, transform_indices = @transform_6, window_bounds = array<i64: 8, 128>}]} {
    %c0 = arith.constant 0 : index
    %c0_0 = arith.constant 0 : index
    %0 = memref.load %arg1[%c0, %c0_0] : memref<8x4xi32, #tpu.memory_space<smem>>
    %1 = arith.index_cast %0 : i32 to index
    %c0_1 = arith.constant 0 : index
    %c0_2 = arith.constant 0 : index
    %2 = vector.load %arg2[%1, %c0_1, %c0_2] : memref<50x1x8xf32, #tpu.memory_space<vmem>>, vector<1x1x8xf32>
    %3 = vector.shape_cast %2 : vector<1x1x8xf32> to vector<1x8xf32>
    %c0_3 = arith.constant 0 : index
    %c0_4 = arith.constant 0 : index
    %4 = vector.load %arg9[%c0_3, %c0_4] : memref<8x32xf32, #tpu.memory_space<vmem>>, vector<1x8xf32>
    tpu.vector_store %arg9[%c0_3, %c0_4], %3 {strides = array<i32>} : memref<8x32xf32, #tpu.memory_space<vmem>>, vector<1x8xf32>,
    %c0_5 = arith.constant 0 : index
    %c1 = arith.constant 1 : index
    %5 = memref.load %arg1[%c0_5, %c1] : memref<8x4xi32, #tpu.memory_space<smem>>
    %6 = arith.index_cast %5 : i32 to index
    %c0_6 = arith.constant 0 : index
    %c0_7 = arith.constant 0 : index
    %7 = vector.load %arg2[%6, %c0_6, %c0_7] : memref<50x1x8xf32, #tpu.memory_space<vmem>>, vector<1x1x8xf32>
    %8 = vector.shape_cast %7 : vector<1x1x8xf32> to vector<1x8xf32>
    %c0_8 = arith.constant 0 : index
    %c8 = arith.constant 8 : index
    %9 = vector.load %arg9[%c0_8, %c8] : memref<8x32xf32, #tpu.memory_space<vmem>>, vector<1x8xf32>
    tpu.vector_store %arg9[%c0_8, %c8], %8 {strides = array<i32>} : memref<8x32xf32, #tpu.memory_space<vmem>>, vector<1x8xf32>,
    %c0_9 = arith.constant 0 : index
    %c2 = arith.constant 2 : index
    %10 = memref.load %arg1[%c0_9, %c2] : memref<8x4xi32, #tpu.memory_space<smem>>
    %11 = arith.index_cast %10 : i32 to index
    %c0_10 = arith.constant 0 : index
    %c0_11 = arith.constant 0 : index
    %12 = vector.load %arg2[%11, %c0_10, %c0_11] : memref<50x1x8xf32, #tpu.memory_space<vmem>>, vector<1x1x8xf32>
    %13 = vector.shape_cast %12 : vector<1x1x8xf32> to vector<1x8xf32>
    %c0_12 = arith.constant 0 : index
    %c16 = arith.constant 16 : index
    %14 = vector.load %arg9[%c0_12, %c16] : memref<8x32xf32, #tpu.memory_space<vmem>>, vector<1x8xf32>
    tpu.vector_store %arg9[%c0_12, %c16], %13 {strides = array<i32>} : memref<8x32xf32, #tpu.memory_space<vmem>>, vector<1x8xf32>,
    %c0_13 = arith.constant 0 : index
    %c3 = arith.constant 3 : index
    %15 = memref.load %arg1[%c0_13, %c3] : memref<8x4xi32, #tpu.memory_space<smem>>
    %16 = arith.index_cast %15 : i32 to index
    %c0_14 = arith.constant 0 : index
    %c0_15 = arith.constant 0 : index
    %17 = vector.load %arg2[%16, %c0_14, %c0_15] : memref<50x1x8xf32, #tpu.memory_space<vmem>>, vector<1x1x8xf32>
    %18 = vector.shape_cast %17 : vector<1x1x8xf32> to vector<1x8xf32>
    %c0_16 = arith.constant 0 : index
    %c24 = arith.constant 24 : index
    %19 = vector.load %arg9[%c0_16, %c24] : memref<8x32xf32, #tpu.memory_space<vmem>>, vector<1x8xf32>
    tpu.vector_store %arg9[%c0_16, %c24], %18 {strides = array<i32>} : memref<8x32xf32, #tpu.memory_space<vmem>>, vector<1x8xf32>,
    %c1_17 = arith.constant 1 : index
    %c0_18 = arith.constant 0 : index
    %20 = memref.load %arg1[%c1_17, %c0_18] : memref<8x4xi32, #tpu.memory_space<smem>>
    %21 = arith.index_cast %20 : i32 to index
    %c0_19 = arith.constant 0 : index
    %c0_20 = arith.constant 0 : index
    %22 = vector.load %arg2[%21, %c0_19, %c0_20] : memref<50x1x8xf32, #tpu.memory_space<vmem>>, vector<1x1x8xf32>
    %23 = vector.shape_cast %22 : vector<1x1x8xf32> to vector<1x8xf32>
    %c1_21 = arith.constant 1 : index
    %c0_22 = arith.constant 0 : index
    %24 = vector.load %arg9[%c1_21, %c0_22] : memref<8x32xf32, #tpu.memory_space<vmem>>, vector<1x8xf32>
    tpu.vector_store %arg9[%c1_21, %c0_22], %23 {strides = array<i32>} : memref<8x32xf32, #tpu.memory_space<vmem>>, vector<1x8xf32>,
    %c1_23 = arith.constant 1 : index
    %c1_24 = arith.constant 1 : index
    %25 = memref.load %arg1[%c1_23, %c1_24] : memref<8x4xi32, #tpu.memory_space<smem>>
    %26 = arith.index_cast %25 : i32 to index
    %c0_25 = arith.constant 0 : index
    %c0_26 = arith.constant 0 : index
    %27 = vector.load %arg2[%26, %c0_25, %c0_26] : memref<50x1x8xf32, #tpu.memory_space<vmem>>, vector<1x1x8xf32>
    %28 = vector.shape_cast %27 : vector<1x1x8xf32> to vector<1x8xf32>
    %c1_27 = arith.constant 1 : index
    %c8_28 = arith.constant 8 : index
    %29 = vector.load %arg9[%c1_27, %c8_28] : memref<8x32xf32, #tpu.memory_space<vmem>>, vector<1x8xf32>
    tpu.vector_store %arg9[%c1_27, %c8_28], %28 {strides = array<i32>} : memref<8x32xf32, #tpu.memory_space<vmem>>, vector<1x8xf32>,
    %c1_29 = arith.constant 1 : index
    %c2_30 = arith.constant 2 : index
    %30 = memref.load %arg1[%c1_29, %c2_30] : memref<8x4xi32, #tpu.memory_space<smem>>
    %31 = arith.index_cast %30 : i32 to index
    %c0_31 = arith.constant 0 : index
    %c0_32 = arith.constant 0 : index
    %32 = vector.load %arg2[%31, %c0_31, %c0_32] : memref<50x1x8xf32, #tpu.memory_space<vmem>>, vector<1x1x8xf32>
    %33 = vector.shape_cast %32 : vector<1x1x8xf32> to vector<1x8xf32>
    %c1_33 = arith.constant 1 : index
    %c16_34 = arith.constant 16 : index
    %34 = vector.load %arg9[%c1_33, %c16_34] : memref<8x32xf32, #tpu.memory_space<vmem>>, vector<1x8xf32>
    tpu.vector_store %arg9[%c1_33, %c16_34], %33 {strides = array<i32>} : memref<8x32xf32, #tpu.memory_space<vmem>>, vector<1x8xf32>,
    %c1_35 = arith.constant 1 : index
    %c3_36 = arith.constant 3 : index
    %35 = memref.load %arg1[%c1_35, %c3_36] : memref<8x4xi32, #tpu.memory_space<smem>>
    %36 = arith.index_cast %35 : i32 to index
    %c0_37 = arith.constant 0 : index
    %c0_38 = arith.constant 0 : index
    %37 = vector.load %arg2[%36, %c0_37, %c0_38] : memref<50x1x8xf32, #tpu.memory_space<vmem>>, vector<1x1x8xf32>
    %38 = vector.shape_cast %37 : vector<1x1x8xf32> to vector<1x8xf32>
    %c1_39 = arith.constant 1 : index
    %c24_40 = arith.constant 24 : index
    %39 = vector.load %arg9[%c1_39, %c24_40] : memref<8x32xf32, #tpu.memory_space<vmem>>, vector<1x8xf32>
    tpu.vector_store %arg9[%c1_39, %c24_40], %38 {strides = array<i32>} : memref<8x32xf32, #tpu.memory_space<vmem>>, vector<1x8xf32>,
    %c2_41 = arith.constant 2 : index
    %c0_42 = arith.constant 0 : index
    %40 = memref.load %arg1[%c2_41, %c0_42] : memref<8x4xi32, #tpu.memory_space<smem>>
    %41 = arith.index_cast %40 : i32 to index
    %c0_43 = arith.constant 0 : index
    %c0_44 = arith.constant 0 : index
    %42 = vector.load %arg2[%41, %c0_43, %c0_44] : memref<50x1x8xf32, #tpu.memory_space<vmem>>, vector<1x1x8xf32>
    %43 = vector.shape_cast %42 : vector<1x1x8xf32> to vector<1x8xf32>
    %c2_45 = arith.constant 2 : index
    %c0_46 = arith.constant 0 : index
    %44 = vector.load %arg9[%c2_45, %c0_46] : memref<8x32xf32, #tpu.memory_space<vmem>>, vector<1x8xf32>
    tpu.vector_store %arg9[%c2_45, %c0_46], %43 {strides = array<i32>} : memref<8x32xf32, #tpu.memory_space<vmem>>, vector<1x8xf32>,
    %c2_47 = arith.constant 2 : index
    %c1_48 = arith.constant 1 : index
    %45 = memref.load %arg1[%c2_47, %c1_48] : memref<8x4xi32, #tpu.memory_space<smem>>
    %46 = arith.index_cast %45 : i32 to index
    %c0_49 = arith.constant 0 : index
    %c0_50 = arith.constant 0 : index
    %47 = vector.load %arg2[%46, %c0_49, %c0_50] : memref<50x1x8xf32, #tpu.memory_space<vmem>>, vector<1x1x8xf32>
    %48 = vector.shape_cast %47 : vector<1x1x8xf32> to vector<1x8xf32>
    %c2_51 = arith.constant 2 : index
    %c8_52 = arith.constant 8 : index
    %49 = vector.load %arg9[%c2_51, %c8_52] : memref<8x32xf32, #tpu.memory_space<vmem>>, vector<1x8xf32>
    tpu.vector_store %arg9[%c2_51, %c8_52], %48 {strides = array<i32>} : memref<8x32xf32, #tpu.memory_space<vmem>>, vector<1x8xf32>,
    %c2_53 = arith.constant 2 : index
    %c2_54 = arith.constant 2 : index
    %50 = memref.load %arg1[%c2_53, %c2_54] : memref<8x4xi32, #tpu.memory_space<smem>>
    %51 = arith.index_cast %50 : i32 to index
    %c0_55 = arith.constant 0 : index
    %c0_56 = arith.constant 0 : index
    %52 = vector.load %arg2[%51, %c0_55, %c0_56] : memref<50x1x8xf32, #tpu.memory_space<vmem>>, vector<1x1x8xf32>
    %53 = vector.shape_cast %52 : vector<1x1x8xf32> to vector<1x8xf32>
    %c2_57 = arith.constant 2 : index
    %c16_58 = arith.constant 16 : index
    %54 = vector.load %arg9[%c2_57, %c16_58] : memref<8x32xf32, #tpu.memory_space<vmem>>, vector<1x8xf32>
    tpu.vector_store %arg9[%c2_57, %c16_58], %53 {strides = array<i32>} : memref<8x32xf32, #tpu.memory_space<vmem>>, vector<1x8xf32>,
    %c2_59 = arith.constant 2 : index
    %c3_60 = arith.constant 3 : index
    %55 = memref.load %arg1[%c2_59, %c3_60] : memref<8x4xi32, #tpu.memory_space<smem>>
    %56 = arith.index_cast %55 : i32 to index
    %c0_61 = arith.constant 0 : index
    %c0_62 = arith.constant 0 : index
    %57 = vector.load %arg2[%56, %c0_61, %c0_62] : memref<50x1x8xf32, #tpu.memory_space<vmem>>, vector<1x1x8xf32>
    %58 = vector.shape_cast %57 : vector<1x1x8xf32> to vector<1x8xf32>
    %c2_63 = arith.constant 2 : index
    %c24_64 = arith.constant 24 : index
    %59 = vector.load %arg9[%c2_63, %c24_64] : memref<8x32xf32, #tpu.memory_space<vmem>>, vector<1x8xf32>
    tpu.vector_store %arg9[%c2_63, %c24_64], %58 {strides = array<i32>} : memref<8x32xf32, #tpu.memory_space<vmem>>, vector<1x8xf32>,
    %c3_65 = arith.constant 3 : index
    %c0_66 = arith.constant 0 : index
    %60 = memref.load %arg1[%c3_65, %c0_66] : memref<8x4xi32, #tpu.memory_space<smem>>
    %61 = arith.index_cast %60 : i32 to index
    %c0_67 = arith.constant 0 : index
    %c0_68 = arith.constant 0 : index
    %62 = vector.load %arg2[%61, %c0_67, %c0_68] : memref<50x1x8xf32, #tpu.memory_space<vmem>>, vector<1x1x8xf32>
    %63 = vector.shape_cast %62 : vector<1x1x8xf32> to vector<1x8xf32>
    %c3_69 = arith.constant 3 : index
    %c0_70 = arith.constant 0 : index
    %64 = vector.load %arg9[%c3_69, %c0_70] : memref<8x32xf32, #tpu.memory_space<vmem>>, vector<1x8xf32>
    tpu.vector_store %arg9[%c3_69, %c0_70], %63 {strides = array<i32>} : memref<8x32xf32, #tpu.memory_space<vmem>>, vector<1x8xf32>,
    %c3_71 = arith.constant 3 : index
    %c1_72 = arith.constant 1 : index
    %65 = memref.load %arg1[%c3_71, %c1_72] : memref<8x4xi32, #tpu.memory_space<smem>>
    %66 = arith.index_cast %65 : i32 to index
    %c0_73 = arith.constant 0 : index
    %c0_74 = arith.constant 0 : index
    %67 = vector.load %arg2[%66, %c0_73, %c0_74] : memref<50x1x8xf32, #tpu.memory_space<vmem>>, vector<1x1x8xf32>
    %68 = vector.shape_cast %67 : vector<1x1x8xf32> to vector<1x8xf32>
    %c3_75 = arith.constant 3 : index
    %c8_76 = arith.constant 8 : index
    %69 = vector.load %arg9[%c3_75, %c8_76] : memref<8x32xf32, #tpu.memory_space<vmem>>, vector<1x8xf32>
    tpu.vector_store %arg9[%c3_75, %c8_76], %68 {strides = array<i32>} : memref<8x32xf32, #tpu.memory_space<vmem>>, vector<1x8xf32>,
    %c3_77 = arith.constant 3 : index
    %c2_78 = arith.constant 2 : index
    %70 = memref.load %arg1[%c3_77, %c2_78] : memref<8x4xi32, #tpu.memory_space<smem>>
    %71 = arith.index_cast %70 : i32 to index
    %c0_79 = arith.constant 0 : index
    %c0_80 = arith.constant 0 : index
    %72 = vector.load %arg2[%71, %c0_79, %c0_80] : memref<50x1x8xf32, #tpu.memory_space<vmem>>, vector<1x1x8xf32>
    %73 = vector.shape_cast %72 : vector<1x1x8xf32> to vector<1x8xf32>
    %c3_81 = arith.constant 3 : index
    %c16_82 = arith.constant 16 : index
    %74 = vector.load %arg9[%c3_81, %c16_82] : memref<8x32xf32, #tpu.memory_space<vmem>>, vector<1x8xf32>
    tpu.vector_store %arg9[%c3_81, %c16_82], %73 {strides = array<i32>} : memref<8x32xf32, #tpu.memory_space<vmem>>, vector<1x8xf32>,
    %c3_83 = arith.constant 3 : index
    %c3_84 = arith.constant 3 : index
    %75 = memref.load %arg1[%c3_83, %c3_84] : memref<8x4xi32, #tpu.memory_space<smem>>
    %76 = arith.index_cast %75 : i32 to index
    %c0_85 = arith.constant 0 : index
    %c0_86 = arith.constant 0 : index
    %77 = vector.load %arg2[%76, %c0_85, %c0_86] : memref<50x1x8xf32, #tpu.memory_space<vmem>>, vector<1x1x8xf32>
    %78 = vector.shape_cast %77 : vector<1x1x8xf32> to vector<1x8xf32>
    %c3_87 = arith.constant 3 : index
    %c24_88 = arith.constant 24 : index
    %79 = vector.load %arg9[%c3_87, %c24_88] : memref<8x32xf32, #tpu.memory_space<vmem>>, vector<1x8xf32>
    tpu.vector_store %arg9[%c3_87, %c24_88], %78 {strides = array<i32>} : memref<8x32xf32, #tpu.memory_space<vmem>>, vector<1x8xf32>,
    %c4 = arith.constant 4 : index
    %c0_89 = arith.constant 0 : index
    %80 = memref.load %arg1[%c4, %c0_89] : memref<8x4xi32, #tpu.memory_space<smem>>
    %81 = arith.index_cast %80 : i32 to index
    %c0_90 = arith.constant 0 : index
    %c0_91 = arith.constant 0 : index
    %82 = vector.load %arg2[%81, %c0_90, %c0_91] : memref<50x1x8xf32, #tpu.memory_space<vmem>>, vector<1x1x8xf32>
    %83 = vector.shape_cast %82 : vector<1x1x8xf32> to vector<1x8xf32>
    %c4_92 = arith.constant 4 : index
    %c0_93 = arith.constant 0 : index
    %84 = vector.load %arg9[%c4_92, %c0_93] : memref<8x32xf32, #tpu.memory_space<vmem>>, vector<1x8xf32>
    tpu.vector_store %arg9[%c4_92, %c0_93], %83 {strides = array<i32>} : memref<8x32xf32, #tpu.memory_space<vmem>>, vector<1x8xf32>,
    %c4_94 = arith.constant 4 : index
    %c1_95 = arith.constant 1 : index
    %85 = memref.load %arg1[%c4_94, %c1_95] : memref<8x4xi32, #tpu.memory_space<smem>>
    %86 = arith.index_cast %85 : i32 to index
    %c0_96 = arith.constant 0 : index
    %c0_97 = arith.constant 0 : index
    %87 = vector.load %arg2[%86, %c0_96, %c0_97] : memref<50x1x8xf32, #tpu.memory_space<vmem>>, vector<1x1x8xf32>
    %88 = vector.shape_cast %87 : vector<1x1x8xf32> to vector<1x8xf32>
    %c4_98 = arith.constant 4 : index
    %c8_99 = arith.constant 8 : index
    %89 = vector.load %arg9[%c4_98, %c8_99] : memref<8x32xf32, #tpu.memory_space<vmem>>, vector<1x8xf32>
    tpu.vector_store %arg9[%c4_98, %c8_99], %88 {strides = array<i32>} : memref<8x32xf32, #tpu.memory_space<vmem>>, vector<1x8xf32>,
    %c4_100 = arith.constant 4 : index
    %c2_101 = arith.constant 2 : index
    %90 = memref.load %arg1[%c4_100, %c2_101] : memref<8x4xi32, #tpu.memory_space<smem>>
    %91 = arith.index_cast %90 : i32 to index
    %c0_102 = arith.constant 0 : index
    %c0_103 = arith.constant 0 : index
    %92 = vector.load %arg2[%91, %c0_102, %c0_103] : memref<50x1x8xf32, #tpu.memory_space<vmem>>, vector<1x1x8xf32>
    %93 = vector.shape_cast %92 : vector<1x1x8xf32> to vector<1x8xf32>
    %c4_104 = arith.constant 4 : index
    %c16_105 = arith.constant 16 : index
    %94 = vector.load %arg9[%c4_104, %c16_105] : memref<8x32xf32, #tpu.memory_space<vmem>>, vector<1x8xf32>
    tpu.vector_store %arg9[%c4_104, %c16_105], %93 {strides = array<i32>} : memref<8x32xf32, #tpu.memory_space<vmem>>, vector<1x8xf32>,
    %c4_106 = arith.constant 4 : index
    %c3_107 = arith.constant 3 : index
    %95 = memref.load %arg1[%c4_106, %c3_107] : memref<8x4xi32, #tpu.memory_space<smem>>
    %96 = arith.index_cast %95 : i32 to index
    %c0_108 = arith.constant 0 : index
    %c0_109 = arith.constant 0 : index
    %97 = vector.load %arg2[%96, %c0_108, %c0_109] : memref<50x1x8xf32, #tpu.memory_space<vmem>>, vector<1x1x8xf32>
    %98 = vector.shape_cast %97 : vector<1x1x8xf32> to vector<1x8xf32>
    %c4_110 = arith.constant 4 : index
    %c24_111 = arith.constant 24 : index
    %99 = vector.load %arg9[%c4_110, %c24_111] : memref<8x32xf32, #tpu.memory_space<vmem>>, vector<1x8xf32>
    tpu.vector_store %arg9[%c4_110, %c24_111], %98 {strides = array<i32>} : memref<8x32xf32, #tpu.memory_space<vmem>>, vector<1x8xf32>,
    %c5 = arith.constant 5 : index
    %c0_112 = arith.constant 0 : index
    %100 = memref.load %arg1[%c5, %c0_112] : memref<8x4xi32, #tpu.memory_space<smem>>
    %101 = arith.index_cast %100 : i32 to index
    %c0_113 = arith.constant 0 : index
    %c0_114 = arith.constant 0 : index
    %102 = vector.load %arg2[%101, %c0_113, %c0_114] : memref<50x1x8xf32, #tpu.memory_space<vmem>>, vector<1x1x8xf32>
    %103 = vector.shape_cast %102 : vector<1x1x8xf32> to vector<1x8xf32>
    %c5_115 = arith.constant 5 : index
    %c0_116 = arith.constant 0 : index
    %104 = vector.load %arg9[%c5_115, %c0_116] : memref<8x32xf32, #tpu.memory_space<vmem>>, vector<1x8xf32>
    tpu.vector_store %arg9[%c5_115, %c0_116], %103 {strides = array<i32>} : memref<8x32xf32, #tpu.memory_space<vmem>>, vector<1x8xf32>,
    %c5_117 = arith.constant 5 : index
    %c1_118 = arith.constant 1 : index
    %105 = memref.load %arg1[%c5_117, %c1_118] : memref<8x4xi32, #tpu.memory_space<smem>>
    %106 = arith.index_cast %105 : i32 to index
    %c0_119 = arith.constant 0 : index
    %c0_120 = arith.constant 0 : index
    %107 = vector.load %arg2[%106, %c0_119, %c0_120] : memref<50x1x8xf32, #tpu.memory_space<vmem>>, vector<1x1x8xf32>
    %108 = vector.shape_cast %107 : vector<1x1x8xf32> to vector<1x8xf32>
    %c5_121 = arith.constant 5 : index
    %c8_122 = arith.constant 8 : index
    %109 = vector.load %arg9[%c5_121, %c8_122] : memref<8x32xf32, #tpu.memory_space<vmem>>, vector<1x8xf32>
    tpu.vector_store %arg9[%c5_121, %c8_122], %108 {strides = array<i32>} : memref<8x32xf32, #tpu.memory_space<vmem>>, vector<1x8xf32>,
    %c5_123 = arith.constant 5 : index
    %c2_124 = arith.constant 2 : index
    %110 = memref.load %arg1[%c5_123, %c2_124] : memref<8x4xi32, #tpu.memory_space<smem>>
    %111 = arith.index_cast %110 : i32 to index
    %c0_125 = arith.constant 0 : index
    %c0_126 = arith.constant 0 : index
    %112 = vector.load %arg2[%111, %c0_125, %c0_126] : memref<50x1x8xf32, #tpu.memory_space<vmem>>, vector<1x1x8xf32>
    %113 = vector.shape_cast %112 : vector<1x1x8xf32> to vector<1x8xf32>
    %c5_127 = arith.constant 5 : index
    %c16_128 = arith.constant 16 : index
    %114 = vector.load %arg9[%c5_127, %c16_128] : memref<8x32xf32, #tpu.memory_space<vmem>>, vector<1x8xf32>
    tpu.vector_store %arg9[%c5_127, %c16_128], %113 {strides = array<i32>} : memref<8x32xf32, #tpu.memory_space<vmem>>, vector<1x8xf32>,
    %c5_129 = arith.constant 5 : index
    %c3_130 = arith.constant 3 : index
    %115 = memref.load %arg1[%c5_129, %c3_130] : memref<8x4xi32, #tpu.memory_space<smem>>
    %116 = arith.index_cast %115 : i32 to index
    %c0_131 = arith.constant 0 : index
    %c0_132 = arith.constant 0 : index
    %117 = vector.load %arg2[%116, %c0_131, %c0_132] : memref<50x1x8xf32, #tpu.memory_space<vmem>>, vector<1x1x8xf32>
    %118 = vector.shape_cast %117 : vector<1x1x8xf32> to vector<1x8xf32>
    %c5_133 = arith.constant 5 : index
    %c24_134 = arith.constant 24 : index
    %119 = vector.load %arg9[%c5_133, %c24_134] : memref<8x32xf32, #tpu.memory_space<vmem>>, vector<1x8xf32>
    tpu.vector_store %arg9[%c5_133, %c24_134], %118 {strides = array<i32>} : memref<8x32xf32, #tpu.memory_space<vmem>>, vector<1x8xf32>,
    %c6 = arith.constant 6 : index
    %c0_135 = arith.constant 0 : index
    %120 = memref.load %arg1[%c6, %c0_135] : memref<8x4xi32, #tpu.memory_space<smem>>
    %121 = arith.index_cast %120 : i32 to index
    %c0_136 = arith.constant 0 : index
    %c0_137 = arith.constant 0 : index
    %122 = vector.load %arg2[%121, %c0_136, %c0_137] : memref<50x1x8xf32, #tpu.memory_space<vmem>>, vector<1x1x8xf32>
    %123 = vector.shape_cast %122 : vector<1x1x8xf32> to vector<1x8xf32>
    %c6_138 = arith.constant 6 : index
    %c0_139 = arith.constant 0 : index
    %124 = vector.load %arg9[%c6_138, %c0_139] : memref<8x32xf32, #tpu.memory_space<vmem>>, vector<1x8xf32>
    tpu.vector_store %arg9[%c6_138, %c0_139], %123 {strides = array<i32>} : memref<8x32xf32, #tpu.memory_space<vmem>>, vector<1x8xf32>,
    %c6_140 = arith.constant 6 : index
    %c1_141 = arith.constant 1 : index
    %125 = memref.load %arg1[%c6_140, %c1_141] : memref<8x4xi32, #tpu.memory_space<smem>>
    %126 = arith.index_cast %125 : i32 to index
    %c0_142 = arith.constant 0 : index
    %c0_143 = arith.constant 0 : index
    %127 = vector.load %arg2[%126, %c0_142, %c0_143] : memref<50x1x8xf32, #tpu.memory_space<vmem>>, vector<1x1x8xf32>
    %128 = vector.shape_cast %127 : vector<1x1x8xf32> to vector<1x8xf32>
    %c6_144 = arith.constant 6 : index
    %c8_145 = arith.constant 8 : index
    %129 = vector.load %arg9[%c6_144, %c8_145] : memref<8x32xf32, #tpu.memory_space<vmem>>, vector<1x8xf32>
    tpu.vector_store %arg9[%c6_144, %c8_145], %128 {strides = array<i32>} : memref<8x32xf32, #tpu.memory_space<vmem>>, vector<1x8xf32>,
    %c6_146 = arith.constant 6 : index
    %c2_147 = arith.constant 2 : index
    %130 = memref.load %arg1[%c6_146, %c2_147] : memref<8x4xi32, #tpu.memory_space<smem>>
    %131 = arith.index_cast %130 : i32 to index
    %c0_148 = arith.constant 0 : index
    %c0_149 = arith.constant 0 : index
    %132 = vector.load %arg2[%131, %c0_148, %c0_149] : memref<50x1x8xf32, #tpu.memory_space<vmem>>, vector<1x1x8xf32>
    %133 = vector.shape_cast %132 : vector<1x1x8xf32> to vector<1x8xf32>
    %c6_150 = arith.constant 6 : index
    %c16_151 = arith.constant 16 : index
    %134 = vector.load %arg9[%c6_150, %c16_151] : memref<8x32xf32, #tpu.memory_space<vmem>>, vector<1x8xf32>
    tpu.vector_store %arg9[%c6_150, %c16_151], %133 {strides = array<i32>} : memref<8x32xf32, #tpu.memory_space<vmem>>, vector<1x8xf32>,
    %c6_152 = arith.constant 6 : index
    %c3_153 = arith.constant 3 : index
    %135 = memref.load %arg1[%c6_152, %c3_153] : memref<8x4xi32, #tpu.memory_space<smem>>
    %136 = arith.index_cast %135 : i32 to index
    %c0_154 = arith.constant 0 : index
    %c0_155 = arith.constant 0 : index
    %137 = vector.load %arg2[%136, %c0_154, %c0_155] : memref<50x1x8xf32, #tpu.memory_space<vmem>>, vector<1x1x8xf32>
    %138 = vector.shape_cast %137 : vector<1x1x8xf32> to vector<1x8xf32>
    %c6_156 = arith.constant 6 : index
    %c24_157 = arith.constant 24 : index
    %139 = vector.load %arg9[%c6_156, %c24_157] : memref<8x32xf32, #tpu.memory_space<vmem>>, vector<1x8xf32>
    tpu.vector_store %arg9[%c6_156, %c24_157], %138 {strides = array<i32>} : memref<8x32xf32, #tpu.memory_space<vmem>>, vector<1x8xf32>,
    %c7 = arith.constant 7 : index
    %c0_158 = arith.constant 0 : index
    %140 = memref.load %arg1[%c7, %c0_158] : memref<8x4xi32, #tpu.memory_space<smem>>
    %141 = arith.index_cast %140 : i32 to index
    %c0_159 = arith.constant 0 : index
    %c0_160 = arith.constant 0 : index
    %142 = vector.load %arg2[%141, %c0_159, %c0_160] : memref<50x1x8xf32, #tpu.memory_space<vmem>>, vector<1x1x8xf32>
    %143 = vector.shape_cast %142 : vector<1x1x8xf32> to vector<1x8xf32>
    %c7_161 = arith.constant 7 : index
    %c0_162 = arith.constant 0 : index
    %144 = vector.load %arg9[%c7_161, %c0_162] : memref<8x32xf32, #tpu.memory_space<vmem>>, vector<1x8xf32>
    tpu.vector_store %arg9[%c7_161, %c0_162], %143 {strides = array<i32>} : memref<8x32xf32, #tpu.memory_space<vmem>>, vector<1x8xf32>,
    %c7_163 = arith.constant 7 : index
    %c1_164 = arith.constant 1 : index
    %145 = memref.load %arg1[%c7_163, %c1_164] : memref<8x4xi32, #tpu.memory_space<smem>>
    %146 = arith.index_cast %145 : i32 to index
    %c0_165 = arith.constant 0 : index
    %c0_166 = arith.constant 0 : index
    %147 = vector.load %arg2[%146, %c0_165, %c0_166] : memref<50x1x8xf32, #tpu.memory_space<vmem>>, vector<1x1x8xf32>
    %148 = vector.shape_cast %147 : vector<1x1x8xf32> to vector<1x8xf32>
    %c7_167 = arith.constant 7 : index
    %c8_168 = arith.constant 8 : index
    %149 = vector.load %arg9[%c7_167, %c8_168] : memref<8x32xf32, #tpu.memory_space<vmem>>, vector<1x8xf32>
    tpu.vector_store %arg9[%c7_167, %c8_168], %148 {strides = array<i32>} : memref<8x32xf32, #tpu.memory_space<vmem>>, vector<1x8xf32>,
    %c7_169 = arith.constant 7 : index
    %c2_170 = arith.constant 2 : index
    %150 = memref.load %arg1[%c7_169, %c2_170] : memref<8x4xi32, #tpu.memory_space<smem>>
    %151 = arith.index_cast %150 : i32 to index
    %c0_171 = arith.constant 0 : index
    %c0_172 = arith.constant 0 : index
    %152 = vector.load %arg2[%151, %c0_171, %c0_172] : memref<50x1x8xf32, #tpu.memory_space<vmem>>, vector<1x1x8xf32>
    %153 = vector.shape_cast %152 : vector<1x1x8xf32> to vector<1x8xf32>
    %c7_173 = arith.constant 7 : index
    %c16_174 = arith.constant 16 : index
    %154 = vector.load %arg9[%c7_173, %c16_174] : memref<8x32xf32, #tpu.memory_space<vmem>>, vector<1x8xf32>
    tpu.vector_store %arg9[%c7_173, %c16_174], %153 {strides = array<i32>} : memref<8x32xf32, #tpu.memory_space<vmem>>, vector<1x8xf32>,
    %c7_175 = arith.constant 7 : index
    %c3_176 = arith.constant 3 : index
    %155 = memref.load %arg1[%c7_175, %c3_176] : memref<8x4xi32, #tpu.memory_space<smem>>
    %156 = arith.index_cast %155 : i32 to index
    %c0_177 = arith.constant 0 : index
    %c0_178 = arith.constant 0 : index
    %157 = vector.load %arg2[%156, %c0_177, %c0_178] : memref<50x1x8xf32, #tpu.memory_space<vmem>>, vector<1x1x8xf32>
    %158 = vector.shape_cast %157 : vector<1x1x8xf32> to vector<1x8xf32>
    %c7_179 = arith.constant 7 : index
    %c24_180 = arith.constant 24 : index
    %159 = vector.load %arg9[%c7_179, %c24_180] : memref<8x32xf32, #tpu.memory_space<vmem>>, vector<1x8xf32>
    tpu.vector_store %arg9[%c7_179, %c24_180], %158 {strides = array<i32>} : memref<8x32xf32, #tpu.memory_space<vmem>>, vector<1x8xf32>,
    %c0_181 = arith.constant 0 : index
    %c0_182 = arith.constant 0 : index
    %160 = vector.load %arg9[%c0_181, %c0_182] : memref<8x32xf32, #tpu.memory_space<vmem>>, vector<8x32xf32>
    %c0_183 = arith.constant 0 : index
    %c0_184 = arith.constant 0 : index
    %161 = vector.load %arg7[%c0_183, %c0_184] : memref<4x128xf32, #tpu.memory_space<vmem>>, vector<1x128xf32>
    %c1_185 = arith.constant 1 : index
    %c0_186 = arith.constant 0 : index
    %162 = vector.load %arg7[%c1_185, %c0_186] : memref<4x128xf32, #tpu.memory_space<vmem>>, vector<1x128xf32>
    %c2_187 = arith.constant 2 : index
    %c0_188 = arith.constant 0 : index
    %163 = vector.load %arg7[%c2_187, %c0_188] : memref<4x128xf32, #tpu.memory_space<vmem>>, vector<1x128xf32>
    %c3_189 = arith.constant 3 : index
    %c0_190 = arith.constant 0 : index
    %164 = vector.load %arg7[%c3_189, %c0_190] : memref<4x128xf32, #tpu.memory_space<vmem>>, vector<1x128xf32>
    %c0_191 = arith.constant 0 : index
    %c0_192 = arith.constant 0 : index
    %165 = vector.load %arg3[%c0_191, %c0_192] : memref<32x128xf32, #tpu.memory_space<vmem>>, vector<32x128xf32>
    %cst = arith.constant dense<0.000000e+00> : vector<8x128xf32>
    %166 = tpu.matmul %160, %165, %cst {dimension_numbers = #tpu.dot_dimension_numbers<[1], [0], [0], [1], [0, 0, 1, 1], [], []>} : vector<8x32xf32>, vector<32x128xf32>, vector<8x128xf32> -> vector<8x128xf32>
    %167 = vector.broadcast %161 : vector<1x128xf32> to vector<8x128xf32>
    %168 = arith.addf %166, %167 : vector<8x128xf32>
    %169 = vector.extract_strided_slice %168 {offsets = [0, 0], sizes = [8, 32], strides = [1, 1]} : vector<8x128xf32> to vector<8x32xf32>
    %170 = arith.negf %169 : vector<8x32xf32>
    %171 = math.exp %170 : vector<8x32xf32>
    %cst_193 = arith.constant 1.000000e+00 : f32
    %172 = vector.broadcast %cst_193 : f32 to vector<8x32xf32>
    %173 = arith.addf %172, %171 : vector<8x32xf32>
    %174 = arith.divf %172, %173 : vector<8x32xf32>
    %175 = vector.extract_strided_slice %168 {offsets = [0, 32], sizes = [8, 32], strides = [1, 1]} : vector<8x128xf32> to vector<8x32xf32>
    %176 = math.tanh %175 : vector<8x32xf32>
    %177 = vector.extract_strided_slice %168 {offsets = [0, 64], sizes = [8, 32], strides = [1, 1]} : vector<8x128xf32> to vector<8x32xf32>
    %178 = arith.negf %177 : vector<8x32xf32>
    %179 = math.exp %178 : vector<8x32xf32>
    %cst_194 = arith.constant 1.000000e+00 : f32
    %180 = vector.broadcast %cst_194 : f32 to vector<8x32xf32>
    %181 = arith.addf %180, %179 : vector<8x32xf32>
    %182 = arith.divf %180, %181 : vector<8x32xf32>
    %183 = arith.mulf %174, %176 : vector<8x32xf32>
    %184 = math.tanh %183 : vector<8x32xf32>
    %185 = arith.mulf %182, %184 : vector<8x32xf32>
    %c0_195 = arith.constant 0 : index
    %c0_196 = arith.constant 0 : index
    %186 = vector.load %arg4[%c0_195, %c0_196] : memref<32x128xf32, #tpu.memory_space<vmem>>, vector<32x128xf32>
    %cst_197 = arith.constant dense<0.000000e+00> : vector<8x128xf32>
    %187 = tpu.matmul %185, %186, %cst_197 {dimension_numbers = #tpu.dot_dimension_numbers<[1], [0], [0], [1], [0, 0, 1, 1], [], []>} : vector<8x32xf32>, vector<32x128xf32>, vector<8x128xf32> -> vector<8x128xf32>
    %188 = vector.broadcast %162 : vector<1x128xf32> to vector<8x128xf32>
    %189 = arith.addf %187, %188 : vector<8x128xf32>
    %190 = vector.extract_strided_slice %189 {offsets = [0, 0], sizes = [8, 32], strides = [1, 1]} : vector<8x128xf32> to vector<8x32xf32>
    %191 = arith.negf %190 : vector<8x32xf32>
    %192 = math.exp %191 : vector<8x32xf32>
    %cst_198 = arith.constant 1.000000e+00 : f32
    %193 = vector.broadcast %cst_198 : f32 to vector<8x32xf32>
    %194 = arith.addf %193, %192 : vector<8x32xf32>
    %195 = arith.divf %193, %194 : vector<8x32xf32>
    %196 = vector.extract_strided_slice %189 {offsets = [0, 32], sizes = [8, 32], strides = [1, 1]} : vector<8x128xf32> to vector<8x32xf32>
    %197 = math.tanh %196 : vector<8x32xf32>
    %198 = vector.extract_strided_slice %189 {offsets = [0, 64], sizes = [8, 32], strides = [1, 1]} : vector<8x128xf32> to vector<8x32xf32>
    %199 = arith.negf %198 : vector<8x32xf32>
    %200 = math.exp %199 : vector<8x32xf32>
    %cst_199 = arith.constant 1.000000e+00 : f32
    %201 = vector.broadcast %cst_199 : f32 to vector<8x32xf32>
    %202 = arith.addf %201, %200 : vector<8x32xf32>
    %203 = arith.divf %201, %202 : vector<8x32xf32>
    %204 = arith.mulf %195, %197 : vector<8x32xf32>
    %205 = math.tanh %204 : vector<8x32xf32>
    %206 = arith.mulf %203, %205 : vector<8x32xf32>
    %c0_200 = arith.constant 0 : index
    %c0_201 = arith.constant 0 : index
    %207 = vector.load %arg5[%c0_200, %c0_201] : memref<32x128xf32, #tpu.memory_space<vmem>>, vector<32x128xf32>
    %cst_202 = arith.constant dense<0.000000e+00> : vector<8x128xf32>
    %208 = tpu.matmul %206, %207, %cst_202 {dimension_numbers = #tpu.dot_dimension_numbers<[1], [0], [0], [1], [0, 0, 1, 1], [], []>} : vector<8x32xf32>, vector<32x128xf32>, vector<8x128xf32> -> vector<8x128xf32>
    %209 = vector.broadcast %163 : vector<1x128xf32> to vector<8x128xf32>
    %210 = arith.addf %208, %209 : vector<8x128xf32>
    %cst_203 = arith.constant 0.000000e+00 : f32
    %211 = vector.broadcast %cst_203 : f32 to vector<8x128xf32>
    %212 = arith.maximumf %210, %211 : vector<8x128xf32>
    %c0_204 = arith.constant 0 : index
    %c0_205 = arith.constant 0 : index
    %213 = vector.load %arg6[%c0_204, %c0_205] : memref<128x128xf32, #tpu.memory_space<vmem>>, vector<128x128xf32>
    %cst_206 = arith.constant dense<0.000000e+00> : vector<8x128xf32>
    %214 = tpu.matmul %212, %213, %cst_206 {dimension_numbers = #tpu.dot_dimension_numbers<[1], [0], [0], [1], [0, 0, 1, 1], [], []>} : vector<8x128xf32>, vector<128x128xf32>, vector<8x128xf32> -> vector<8x128xf32>
    %215 = vector.broadcast %164 : vector<1x128xf32> to vector<8x128xf32>
    %216 = arith.addf %214, %215 : vector<8x128xf32>
    %cst_207 = arith.constant 0.000000e+00 : f32
    %217 = vector.broadcast %cst_207 : f32 to vector<8x128xf32>
    %218 = arith.maximumf %216, %217 : vector<8x128xf32>
    %219 = tpu.iota {dimensions = array<i32: 1>} : vector<8x128xi32>
    %c8_i32 = arith.constant 8 : i32
    %220 = vector.broadcast %c8_i32 : i32 to vector<8x128xi32>
    %221 = arith.cmpi slt, %219, %220 : vector<8x128xi32>
    %cst_208 = arith.constant -1.000000e+30 : f32
    %222 = vector.broadcast %cst_208 : f32 to vector<8x128xf32>
    %223 = arith.select %221, %218, %222 : vector<8x128xi1>, vector<8x128xf32>
    %cst_209 = arith.constant dense<0xFF800000> : vector<8xf32>
    %224 = vector.multi_reduction <maximumf>, %223, %cst_209 [1] : vector<8x128xf32> to vector<8xf32>
    %225 = vector.shape_cast %224 : vector<8xf32> to vector<8x1xf32>
    %226 = vector.broadcast %225 : vector<8x1xf32> to vector<8x128xf32>
    %227 = arith.subf %223, %226 : vector<8x128xf32>
    %228 = math.exp %227 : vector<8x128xf32>
    %cst_210 = arith.constant dense<0.000000e+00> : vector<8xf32>
    %229 = vector.multi_reduction <add>, %228, %cst_210 [1] : vector<8x128xf32> to vector<8xf32>
    %230 = vector.shape_cast %229 : vector<8xf32> to vector<8x1xf32>
    %231 = math.log %230 : vector<8x1xf32>
    %232 = vector.broadcast %231 : vector<8x1xf32> to vector<8x128xf32>
    %233 = arith.subf %227, %232 : vector<8x128xf32>
    %c0_211 = arith.constant 0 : index
    %c0_212 = arith.constant 0 : index
    %234 = vector.load %arg8[%c0_211, %c0_212] : memref<8x128xf32, #tpu.memory_space<vmem>>, vector<8x128xf32>
    tpu.vector_store %arg8[%c0_211, %c0_212], %233 {strides = array<i32>} : memref<8x128xf32, #tpu.memory_space<vmem>>, vector<8x128xf32>,
    return
  }
  func.func @transform_0(%arg0: i32, %arg1: memref<8x4xi32, #tpu.memory_space<smem>>) -> (i32, i32, i32) {
    %c0_i32 = arith.constant 0 : i32
    %c0_i32_0 = arith.constant 0 : i32
    %c0_i32_1 = arith.constant 0 : i32
    %c0_i32_2 = arith.constant 0 : i32
    return %c0_i32, %c0_i32_0, %c0_i32_1 : i32, i32, i32
  }
  func.func @transform_1(%arg0: i32, %arg1: memref<8x4xi32, #tpu.memory_space<smem>>) -> (i32, i32) {
    %c0_i32 = arith.constant 0 : i32
    %c0_i32_0 = arith.constant 0 : i32
    %c0_i32_1 = arith.constant 0 : i32
    return %c0_i32, %c0_i32_0 : i32, i32
  }
  func.func @transform_2(%arg0: i32, %arg1: memref<8x4xi32, #tpu.memory_space<smem>>) -> (i32, i32) {
    %c0_i32 = arith.constant 0 : i32
    %c0_i32_0 = arith.constant 0 : i32
    %c0_i32_1 = arith.constant 0 : i32
    return %c0_i32, %c0_i32_0 : i32, i32
  }
  func.func @transform_3(%arg0: i32, %arg1: memref<8x4xi32, #tpu.memory_space<smem>>) -> (i32, i32) {
    %c0_i32 = arith.constant 0 : i32
    %c0_i32_0 = arith.constant 0 : i32
    %c0_i32_1 = arith.constant 0 : i32
    return %c0_i32, %c0_i32_0 : i32, i32
  }
  func.func @transform_4(%arg0: i32, %arg1: memref<8x4xi32, #tpu.memory_space<smem>>) -> (i32, i32) {
    %c0_i32 = arith.constant 0 : i32
    %c0_i32_0 = arith.constant 0 : i32
    %c0_i32_1 = arith.constant 0 : i32
    return %c0_i32, %c0_i32_0 : i32, i32
  }
  func.func @transform_5(%arg0: i32, %arg1: memref<8x4xi32, #tpu.memory_space<smem>>) -> (i32, i32) {
    %c0_i32 = arith.constant 0 : i32
    %c0_i32_0 = arith.constant 0 : i32
    %c0_i32_1 = arith.constant 0 : i32
    return %c0_i32, %c0_i32_0 : i32, i32
  }
  func.func @transform_6(%arg0: i32, %arg1: memref<8x4xi32, #tpu.memory_space<smem>>) -> (i32, i32) {
    %c0_i32 = arith.constant 0 : i32
    %c0_i32_0 = arith.constant 0 : i32
    %c0_i32_1 = arith.constant 0 : i32
    return %c0_i32, %c0_i32_0 : i32, i32
  }
}

</mosaic_0001>

<llo_original>
// kernel: example_net_forward.1
$region0: #{example_net_forward.1}
  #allocation0 [shape = 'u32[]', space=smem, size = 0x4, offset = 0x4, fixed_abs, tag = 'smem constant byte address 0x4 - core index']
  #allocation1 [shape = 'u32[144,128]{1,0:T(1,128)}', space=vmem, size = 0x12000, scoped, tag = 'internal scratch']
  #allocation2 [shape = 'f32[8,32]{1,0:T(8,128)}', space=vmem, size = 0x1000, scoped, tag = 'scratch operand']
  #allocation3 [shape = 's32[1]{0}', space=sflag, size = 0x4, scoped, tag = 'scoped memory for example_net_forward.1']
  #allocation4 [shape = 'u8[4096]{0}', space=smem, size = 0x1000, scoped, tag = 'prefetched SMEM operand 0']
  %s0 = inlined_call_operand.vmem [shape: s32[8,4], index: 0, kind: input, shape index: {}]
  %s1 = inlined_call_operand.vmem [shape: f32[50,1,8], index: 1, kind: input, shape index: {}]
  %s2 = inlined_call_operand.vmem [shape: f32[32,128], index: 2, kind: input, shape index: {}]
  %s3 = inlined_call_operand.vmem [shape: f32[32,128], index: 3, kind: input, shape index: {}]
  %s4 = inlined_call_operand.hbm [shape: f32[32,128], index: 4, kind: input, shape index: {}]
  %s5 = inlined_call_operand.hbm [shape: f32[128,128], index: 5, kind: input, shape index: {}]
  %s6 = inlined_call_operand.vmem [shape: f32[4,128], index: 6, kind: input, shape index: {}]
  %s7 = inlined_call_operand.hbm [shape: f32[8,128], index: 7, kind: output, shape index: {}]
  %s8 = sld [smem:[#allocation0]]
  $region42: #{example_net_forward.1} parent=0
    _
  %s10 = ssub.s32 1, %s8
  %s11 = scalar_select 0, %s10, %s8
  %s12 = sshll.u32 %s0, 4
  %s13 = int_to_ptr.vmem [resolvable:$true] %s12
  %15 = dma.vmem_to_smem %s13, 128, [#allocation4], [#allocation3]
  %16 = dma.done [#allocation3], 128
  %17 = sfence
  $region1: #{example_net_forward.1} parent=0
    #allocation5 [shape = 'u8[16384]{0}', space=vmem, size = 0x4000, scoped, tag = 'input window, operand 4, single buffered']
    #allocation6 [shape = 's32[1]{0}', space=sflag, size = 0x4, scoped, tag = 'scoped memory for example_net_forward.1']
    #allocation7 [shape = 's32[1]{0}', space=sflag, size = 0x4, scoped, tag = 'scoped memory for example_net_forward.1']
    #allocation8 [shape = 'u8[65536]{0}', space=vmem, size = 0x10000, scoped, tag = 'input window, operand 5, single buffered']
    #allocation9 [shape = 's32[1]{0}', space=sflag, size = 0x4, scoped, tag = 'scoped memory for example_net_forward.1']
    #allocation10 [shape = 'u8[4096]{0}', space=vmem, size = 0x1000, scoped, tag = 'output window, operand 0, single buffered']
    %18 = vsyncpa [#allocation6], 0
    %19 = vsyncpa [#allocation9], 0
    %20 = vsyncpa [#allocation7], 0
    // Predicated region
    $region2: #{example_net_forward.1} parent=1 // pred_check
      _
    $region3: #{example_net_forward.1} parent=1 // pred_check_branch
      %22 = sbr.rel (0) target = $region5
    $region4: #{example_net_forward.1} parent=1 // pred_region
      _
    $region5: #{example_net_forward.1} parent=1 // pred_fallthru
      _
    // Predicated region
    $region6: #{example_net_forward.1} parent=1 // pred_check
      _
    $region7: #{example_net_forward.1} parent=1 // pred_check_branch
      %24 = sbr.rel (0) target = $region9
    $region8: #{example_net_forward.1} parent=1 // pred_region
      _
    $region9: #{example_net_forward.1} parent=1 // pred_fallthru
      _
    // Predicated region
    $region10: #{example_net_forward.1} parent=1 // pred_check
      _
    $region11: #{example_net_forward.1} parent=1 // pred_check_branch
      %26 = sbr.rel (0) target = $region13
    $region12: #{example_net_forward.1} parent=1 // pred_region
      _
    $region13: #{example_net_forward.1} parent=1 // pred_fallthru
      _
    // Predicated region
    $region14: #{example_net_forward.1} parent=1 // pred_check
      _
    $region15: #{example_net_forward.1} parent=1 // pred_check_branch
      %28 = sbr.rel (0) target = $region17
    $region16: #{example_net_forward.1} parent=1 // pred_region
      %s30 = ssub.s32 512, 512
      %31 = vsyncadd [#allocation6], %s30
      %s32 = sshll.u32 [#allocation5], 4
      %s33 = int_to_ptr.vmem [resolvable:$true] %s32
      %38 = dma.hbm_to_vmem [thread:$0]  %s4, 512, %s33, [#allocation6], 128, 128, 8
    $region17: #{example_net_forward.1} parent=1 // pred_fallthru
      _
    // Predicated region
    $region18: #{example_net_forward.1} parent=1 // pred_check
      _
    $region19: #{example_net_forward.1} parent=1 // pred_check_branch
      %40 = sbr.rel (0) target = $region21
    $region20: #{example_net_forward.1} parent=1 // pred_region
      %s42 = ssub.s32 2048, 2048
      %43 = vsyncadd [#allocation9], %s42
      %s44 = sshll.u32 [#allocation8], 4
      %s45 = int_to_ptr.vmem [resolvable:$true] %s44
      %50 = dma.hbm_to_vmem [thread:$0]  %s5, 2048, %s45, [#allocation9], 128, 128, 8
    $region21: #{example_net_forward.1} parent=1 // pred_fallthru
      _
    // Predicated region
    $region22: #{example_net_forward.1} parent=1 // pred_check
      _
    $region23: #{example_net_forward.1} parent=1 // pred_check_branch
      %52 = sbr.rel (0) target = $region25
    $region24: #{example_net_forward.1} parent=1 // pred_region
      _
    $region25: #{example_net_forward.1} parent=1 // pred_fallthru
      _
    // Predicated region
    $region26: #{example_net_forward.1} parent=1 // pred_check
      _
    $region27: #{example_net_forward.1} parent=1 // pred_check_branch
      %54 = sbr.rel (0) target = $region29
    $region28: #{example_net_forward.1} parent=1 // pred_region
      %55 = dma.done [#allocation6], 512
    $region29: #{example_net_forward.1} parent=1 // pred_fallthru
      _
    // Predicated region
    $region30: #{example_net_forward.1} parent=1 // pred_check
      _
    $region31: #{example_net_forward.1} parent=1 // pred_check_branch
      %57 = sbr.rel (0) target = $region33
    $region32: #{example_net_forward.1} parent=1 // pred_region
      %58 = dma.done [#allocation9], 2048
    $region33: #{example_net_forward.1} parent=1 // pred_fallthru
      _
    %s59 = sld [smem:[#allocation4]]
    %s60 = scalar_lea.vmem %s1, %s59
    %v61 = vld [vmem:[%s60] sm:$0x1]
    %vm62 = vcmask 57344
    %63 = vst.msk [vmem:[#allocation2] sm:$0x1] %vm62, %v61
    %s64 = sld [smem:[#allocation4 + $0x1]]
    %s65 = scalar_lea.vmem %s1, %s64
    %v66 = vld [vmem:[%s65] sm:$0x1]
    %v68 = vlaneseq
    %v69 = vshrl.u32 %v68, 7
    %v70 = vsub.s32 0, %v69
    %v71 = vrot.slane %v66, %v70
    %72 = vrot.lane.b32.xlu0 %v71, 8
    %v73 = vpop.permute.xlu0 %72
    %vm75 = vcmask 122944
    %76 = vst.msk [vmem:[#allocation2] sm:$0x1] %vm75, %v73
    %s77 = sld [smem:[#allocation4 + $0x2]]
    %s78 = scalar_lea.vmem %s1, %s77
    %v79 = vld [vmem:[%s78] sm:$0x1]
    %v81 = vlaneseq
    %v82 = vshrl.u32 %v81, 7
    %v83 = vsub.s32 0, %v82
    %v84 = vrot.slane %v79, %v83
    %85 = vrot.lane.b32.xlu0 %v84, 16
    %v86 = vpop.permute.xlu0 %85
    %vm88 = vcmask 188544
    %89 = vst.msk [vmem:[#allocation2] sm:$0x1] %vm88, %v86
    %s90 = sld [smem:[#allocation4 + $0x3]]
    %s91 = scalar_lea.vmem %s1, %s90
    %v92 = vld [vmem:[%s91] sm:$0x1]
    %v94 = vlaneseq
    %v95 = vshrl.u32 %v94, 7
    %v96 = vsub.s32 0, %v95
    %v97 = vrot.slane %v92, %v96
    %98 = vrot.lane.b32.xlu0 %v97, 24
    %v99 = vpop.permute.xlu0 %98
    %vm101 = vcmask 254144
    %102 = vst.msk [vmem:[#allocation2] sm:$0x1] %vm101, %v99
    %s103 = sld [smem:[#allocation4 + $0x80]]
    %s104 = scalar_lea.vmem %s1, %s103
    %v105 = vld [vmem:[%s104] sm:$0x1]
    %106 = vst.msk [vmem:[#allocation2 + $0x1] sm:$0x1] %vm62, %v105
    %s107 = sld [smem:[#allocation4 + $0x81]]
    %s108 = scalar_lea.vmem %s1, %s107
    %v109 = vld [vmem:[%s108] sm:$0x1]
    %v111 = vlaneseq
    %v112 = vshrl.u32 %v111, 7
    %v113 = vsub.s32 0, %v112
    %v114 = vrot.slane %v109, %v113
    %115 = vrot.lane.b32.xlu0 %v114, 8
    %v116 = vpop.permute.xlu0 %115
    %118 = vst.msk [vmem:[#allocation2 + $0x1] sm:$0x1] %vm75, %v116
    %s119 = sld [smem:[#allocation4 + $0x82]]
    %s120 = scalar_lea.vmem %s1, %s119
    %v121 = vld [vmem:[%s120] sm:$0x1]
    %v123 = vlaneseq
    %v124 = vshrl.u32 %v123, 7
    %v125 = vsub.s32 0, %v124
    %v126 = vrot.slane %v121, %v125
    %127 = vrot.lane.b32.xlu0 %v126, 16
    %v128 = vpop.permute.xlu0 %127
    %130 = vst.msk [vmem:[#allocation2 + $0x1] sm:$0x1] %vm88, %v128
    %s131 = sld [smem:[#allocation4 + $0x83]]
    %s132 = scalar_lea.vmem %s1, %s131
    %v133 = vld [vmem:[%s132] sm:$0x1]
    %v135 = vlaneseq
    %v136 = vshrl.u32 %v135, 7
    %v137 = vsub.s32 0, %v136
    %v138 = vrot.slane %v133, %v137
    %139 = vrot.lane.b32.xlu0 %v138, 24
    %v140 = vpop.permute.xlu0 %139
    %142 = vst.msk [vmem:[#allocation2 + $0x1] sm:$0x1] %vm101, %v140
    %s143 = sld [smem:[#allocation4 + $0x100]]
    %s144 = scalar_lea.vmem %s1, %s143
    %v145 = vld [vmem:[%s144] sm:$0x1]
    %146 = vst.msk [vmem:[#allocation2 + $0x2] sm:$0x1] %vm62, %v145
    %s147 = sld [smem:[#allocation4 + $0x101]]
    %s148 = scalar_lea.vmem %s1, %s147
    %v149 = vld [vmem:[%s148] sm:$0x1]
    %v151 = vlaneseq
    %v152 = vshrl.u32 %v151, 7
    %v153 = vsub.s32 0, %v152
    %v154 = vrot.slane %v149, %v153
    %155 = vrot.lane.b32.xlu0 %v154, 8
    %v156 = vpop.permute.xlu0 %155
    %158 = vst.msk [vmem:[#allocation2 + $0x2] sm:$0x1] %vm75, %v156
    %s159 = sld [smem:[#allocation4 + $0x102]]
    %s160 = scalar_lea.vmem %s1, %s159
    %v161 = vld [vmem:[%s160] sm:$0x1]
    %v163 = vlaneseq
    %v164 = vshrl.u32 %v163, 7
    %v165 = vsub.s32 0, %v164
    %v166 = vrot.slane %v161, %v165
    %167 = vrot.lane.b32.xlu0 %v166, 16
    %v168 = vpop.permute.xlu0 %167
    %170 = vst.msk [vmem:[#allocation2 + $0x2] sm:$0x1] %vm88, %v168
    %s171 = sld [smem:[#allocation4 + $0x103]]
    %s172 = scalar_lea.vmem %s1, %s171
    %v173 = vld [vmem:[%s172] sm:$0x1]
    %v175 = vlaneseq
    %v176 = vshrl.u32 %v175, 7
    %v177 = vsub.s32 0, %v176
    %v178 = vrot.slane %v173, %v177
    %179 = vrot.lane.b32.xlu0 %v178, 24
    %v180 = vpop.permute.xlu0 %179
    %182 = vst.msk [vmem:[#allocation2 + $0x2] sm:$0x1] %vm101, %v180
    %s183 = sld [smem:[#allocation4 + $0x180]]
    %s184 = scalar_lea.vmem %s1, %s183
    %v185 = vld [vmem:[%s184] sm:$0x1]
    %186 = vst.msk [vmem:[#allocation2 + $0x3] sm:$0x1] %vm62, %v185
    %s187 = sld [smem:[#allocation4 + $0x181]]
    %s188 = scalar_lea.vmem %s1, %s187
    %v189 = vld [vmem:[%s188] sm:$0x1]
    %v191 = vlaneseq
    %v192 = vshrl.u32 %v191, 7
    %v193 = vsub.s32 0, %v192
    %v194 = vrot.slane %v189, %v193
    %195 = vrot.lane.b32.xlu0 %v194, 8
    %v196 = vpop.permute.xlu0 %195
    %198 = vst.msk [vmem:[#allocation2 + $0x3] sm:$0x1] %vm75, %v196
    %s199 = sld [smem:[#allocation4 + $0x182]]
    %s200 = scalar_lea.vmem %s1, %s199
    %v201 = vld [vmem:[%s200] sm:$0x1]
    %v203 = vlaneseq
    %v204 = vshrl.u32 %v203, 7
    %v205 = vsub.s32 0, %v204
    %v206 = vrot.slane %v201, %v205
    %207 = vrot.lane.b32.xlu0 %v206, 16
    %v208 = vpop.permute.xlu0 %207
    %210 = vst.msk [vmem:[#allocation2 + $0x3] sm:$0x1] %vm88, %v208
    %s211 = sld [smem:[#allocation4 + $0x183]]
    %s212 = scalar_lea.vmem %s1, %s211
    %v213 = vld [vmem:[%s212] sm:$0x1]
    %v215 = vlaneseq
    %v216 = vshrl.u32 %v215, 7
    %v217 = vsub.s32 0, %v216
    %v218 = vrot.slane %v213, %v217
    %219 = vrot.lane.b32.xlu0 %v218, 24
    %v220 = vpop.permute.xlu0 %219
    %222 = vst.msk [vmem:[#allocation2 + $0x3] sm:$0x1] %vm101, %v220
    %s223 = sld [smem:[#allocation4 + $0x200]]
    %s224 = scalar_lea.vmem %s1, %s223
    %v225 = vld [vmem:[%s224] sm:$0x1]
    %226 = vst.msk [vmem:[#allocation2 + $0x4] sm:$0x1] %vm62, %v225
    %s227 = sld [smem:[#allocation4 + $0x201]]
    %s228 = scalar_lea.vmem %s1, %s227
    %v229 = vld [vmem:[%s228] sm:$0x1]
    %v231 = vlaneseq
    %v232 = vshrl.u32 %v231, 7
    %v233 = vsub.s32 0, %v232
    %v234 = vrot.slane %v229, %v233
    %235 = vrot.lane.b32.xlu0 %v234, 8
    %v236 = vpop.permute.xlu0 %235
    %238 = vst.msk [vmem:[#allocation2 + $0x4] sm:$0x1] %vm75, %v236
    %s239 = sld [smem:[#allocation4 + $0x202]]
    %s240 = scalar_lea.vmem %s1, %s239
    %v241 = vld [vmem:[%s240] sm:$0x1]
    %v243 = vlaneseq
    %v244 = vshrl.u32 %v243, 7
    %v245 = vsub.s32 0, %v244
    %v246 = vrot.slane %v241, %v245
    %247 = vrot.lane.b32.xlu0 %v246, 16
    %v248 = vpop.permute.xlu0 %247
    %250 = vst.msk [vmem:[#allocation2 + $0x4] sm:$0x1] %vm88, %v248
    %s251 = sld [smem:[#allocation4 + $0x203]]
    %s252 = scalar_lea.vmem %s1, %s251
    %v253 = vld [vmem:[%s252] sm:$0x1]
    %v255 = vlaneseq
    %v256 = vshrl.u32 %v255, 7
    %v257 = vsub.s32 0, %v256
    %v258 = vrot.slane %v253, %v257
    %259 = vrot.lane.b32.xlu0 %v258, 24
    %v260 = vpop.permute.xlu0 %259
    %262 = vst.msk [vmem:[#allocation2 + $0x4] sm:$0x1] %vm101, %v260
    %s263 = sld [smem:[#allocation4 + $0x280]]
    %s264 = scalar_lea.vmem %s1, %s263
    %v265 = vld [vmem:[%s264] sm:$0x1]
    %266 = vst.msk [vmem:[#allocation2 + $0x5] sm:$0x1] %vm62, %v265
    %s267 = sld [smem:[#allocation4 + $0x281]]
    %s268 = scalar_lea.vmem %s1, %s267
    %v269 = vld [vmem:[%s268] sm:$0x1]
    %v271 = vlaneseq
    %v272 = vshrl.u32 %v271, 7
    %v273 = vsub.s32 0, %v272
    %v274 = vrot.slane %v269, %v273
    %275 = vrot.lane.b32.xlu0 %v274, 8
    %v276 = vpop.permute.xlu0 %275
    %278 = vst.msk [vmem:[#allocation2 + $0x5] sm:$0x1] %vm75, %v276
    %s279 = sld [smem:[#allocation4 + $0x282]]
    %s280 = scalar_lea.vmem %s1, %s279
    %v281 = vld [vmem:[%s280] sm:$0x1]
    %v283 = vlaneseq
    %v284 = vshrl.u32 %v283, 7
    %v285 = vsub.s32 0, %v284
    %v286 = vrot.slane %v281, %v285
    %287 = vrot.lane.b32.xlu0 %v286, 16
    %v288 = vpop.permute.xlu0 %287
    %290 = vst.msk [vmem:[#allocation2 + $0x5] sm:$0x1] %vm88, %v288
    %s291 = sld [smem:[#allocation4 + $0x283]]
    %s292 = scalar_lea.vmem %s1, %s291
    %v293 = vld [vmem:[%s292] sm:$0x1]
    %v295 = vlaneseq
    %v296 = vshrl.u32 %v295, 7
    %v297 = vsub.s32 0, %v296
    %v298 = vrot.slane %v293, %v297
    %299 = vrot.lane.b32.xlu0 %v298, 24
    %v300 = vpop.permute.xlu0 %299
    %302 = vst.msk [vmem:[#allocation2 + $0x5] sm:$0x1] %vm101, %v300
    %s303 = sld [smem:[#allocation4 + $0x300]]
    %s304 = scalar_lea.vmem %s1, %s303
    %v305 = vld [vmem:[%s304] sm:$0x1]
    %306 = vst.msk [vmem:[#allocation2 + $0x6] sm:$0x1] %vm62, %v305
    %s307 = sld [smem:[#allocation4 + $0x301]]
    %s308 = scalar_lea.vmem %s1, %s307
    %v309 = vld [vmem:[%s308] sm:$0x1]
    %v311 = vlaneseq
    %v312 = vshrl.u32 %v311, 7
    %v313 = vsub.s32 0, %v312
    %v314 = vrot.slane %v309, %v313
    %315 = vrot.lane.b32.xlu0 %v314, 8
    %v316 = vpop.permute.xlu0 %315
    %318 = vst.msk [vmem:[#allocation2 + $0x6] sm:$0x1] %vm75, %v316
    %s319 = sld [smem:[#allocation4 + $0x302]]
    %s320 = scalar_lea.vmem %s1, %s319
    %v321 = vld [vmem:[%s320] sm:$0x1]
    %v323 = vlaneseq
    %v324 = vshrl.u32 %v323, 7
    %v325 = vsub.s32 0, %v324
    %v326 = vrot.slane %v321, %v325
    %327 = vrot.lane.b32.xlu0 %v326, 16
    %v328 = vpop.permute.xlu0 %327
    %330 = vst.msk [vmem:[#allocation2 + $0x6] sm:$0x1] %vm88, %v328
    %s331 = sld [smem:[#allocation4 + $0x303]]
    %s332 = scalar_lea.vmem %s1, %s331
    %v333 = vld [vmem:[%s332] sm:$0x1]
    %v335 = vlaneseq
    %v336 = vshrl.u32 %v335, 7
    %v337 = vsub.s32 0, %v336
    %v338 = vrot.slane %v333, %v337
    %339 = vrot.lane.b32.xlu0 %v338, 24
    %v340 = vpop.permute.xlu0 %339
    %342 = vst.msk [vmem:[#allocation2 + $0x6] sm:$0x1] %vm101, %v340
    %s343 = sld [smem:[#allocation4 + $0x380]]
    %s344 = scalar_lea.vmem %s1, %s343
    %v345 = vld [vmem:[%s344] sm:$0x1]
    %346 = vst.msk [vmem:[#allocation2 + $0x7] sm:$0x1] %vm62, %v345
    %s347 = sld [smem:[#allocation4 + $0x381]]
    %s348 = scalar_lea.vmem %s1, %s347
    %v349 = vld [vmem:[%s348] sm:$0x1]
    %v351 = vlaneseq
    %v352 = vshrl.u32 %v351, 7
    %v353 = vsub.s32 0, %v352
    %v354 = vrot.slane %v349, %v353
    %355 = vrot.lane.b32.xlu0 %v354, 8
    %v356 = vpop.permute.xlu0 %355
    %358 = vst.msk [vmem:[#allocation2 + $0x7] sm:$0x1] %vm75, %v356
    %s359 = sld [smem:[#allocation4 + $0x382]]
    %s360 = scalar_lea.vmem %s1, %s359
    %v361 = vld [vmem:[%s360] sm:$0x1]
    %v363 = vlaneseq
    %v364 = vshrl.u32 %v363, 7
    %v365 = vsub.s32 0, %v364
    %v366 = vrot.slane %v361, %v365
    %367 = vrot.lane.b32.xlu0 %v366, 16
    %v368 = vpop.permute.xlu0 %367
    %370 = vst.msk [vmem:[#allocation2 + $0x7] sm:$0x1] %vm88, %v368
    %s371 = sld [smem:[#allocation4 + $0x383]]
    %s372 = scalar_lea.vmem %s1, %s371
    %v373 = vld [vmem:[%s372] sm:$0x1]
    %v375 = vlaneseq
    %v376 = vshrl.u32 %v375, 7
    %v377 = vsub.s32 0, %v376
    %v378 = vrot.slane %v373, %v377
    %379 = vrot.lane.b32.xlu0 %v378, 24
    %v380 = vpop.permute.xlu0 %379
    %382 = vst.msk [vmem:[#allocation2 + $0x7] sm:$0x1] %vm101, %v380
    %v383 = vld [vmem:[#allocation2] sm:$0xff]
    %v384 = vld [vmem:[%s6] sm:$0x1]
    %v385 = vld [vmem:[%s6 + $0x1] sm:$0x1]
    %v386 = vld [vmem:[%s6 + $0x2] sm:$0x1]
    %v387 = vld [vmem:[%s6 + $0x3] sm:$0x1]
    %v388 = vld [vmem:[%s2] sm:$0xff]
    %v389 = vld [vmem:[%s2 + $0x8] sm:$0xff]
    %v390 = vld [vmem:[%s2 + $0x10] sm:$0xff]
    %v391 = vld [vmem:[%s2 + $0x18] sm:$0xff]
    %v392 = vlaneseq
    %v393 = vshrl.u32 %v392, 7
    %v394 = vsub.s32 0, %v393
    %v395 = vrot.slane %v384, %v394
    %vm396 = vcmask 261120
    %v398 = vsel %vm396, %v383, 0
    %400 = vmatprep.subr.mxu0 0.0
    %401 = vmatpush1.msra.mxu0 0.0
    %402 = vmatprep.subr.mxu0 0.0
    %403 = vmatpush1.msra.mxu0 0.0
    %404 = vmatprep.subr.mxu0 0.0
    %405 = vmatpush1.msra.mxu0 0.0
    %406 = vmatprep.subr.mxu0 0.0
    %407 = vmatpush1.msra.mxu0 0.0
    %408 = vmatprep.subr.mxu0 0.0
    %409 = vmatpush1.msra.mxu0 0.0
    %410 = vmatprep.subr.mxu0 0.0
    %411 = vmatpush1.msra.mxu0 0.0
    %412 = vmatprep.subr.mxu0 0.0
    %413 = vmatpush1.msra.mxu0 0.0
    %414 = vmatprep.subr.mxu0 0.0
    %415 = vmatpush1.msra.mxu0 0.0
    %416 = vmatprep.subr.mxu0 0.0
    %417 = vmatpush1.msra.mxu0 0.0
    %418 = vmatprep.subr.mxu0 0.0
    %419 = vmatpush1.msra.mxu0 0.0
    %420 = vmatprep.subr.mxu0 0.0
    %421 = vmatpush1.msra.mxu0 0.0
    %422 = vmatprep.subr.mxu0 0.0
    %423 = vmatpush1.msra.mxu0 0.0
    %424 = vmatprep.subr.mxu0 0.0
    %425 = vmatpush1.msra.mxu0 %v391
    %426 = vmatprep.subr.mxu0 0.0
    %427 = vmatpush1.msra.mxu0 %v390
    %428 = vmatprep.subr.mxu0 0.0
    %429 = vmatpush1.msra.mxu0 %v389
    %430 = vmatprep.subr.mxu0 0.0
    %431 = vmatpush1.msra.mxu0 %v388
    %432 = vmatprep.subr.mxu0 0.0
    %433 = vmatpush2.msra.mxu0 0.0
    %434 = vmatprep.subr.mxu0 0.0
    %435 = vmatpush2.msra.mxu0 0.0
    %436 = vmatprep.subr.mxu0 0.0
    %437 = vmatpush2.msra.mxu0 0.0
    %438 = vmatprep.subr.mxu0 0.0
    %439 = vmatpush2.msra.mxu0 0.0
    %440 = vmatprep.subr.mxu0 0.0
    %441 = vmatpush2.msra.mxu0 0.0
    %442 = vmatprep.subr.mxu0 0.0
    %443 = vmatpush2.msra.mxu0 0.0
    %444 = vmatprep.subr.mxu0 0.0
    %445 = vmatpush2.msra.mxu0 0.0
    %446 = vmatprep.subr.mxu0 0.0
    %447 = vmatpush2.msra.mxu0 0.0
    %448 = vmatprep.subr.mxu0 0.0
    %449 = vmatpush2.msra.mxu0 0.0
    %450 = vmatprep.subr.mxu0 0.0
    %451 = vmatpush2.msra.mxu0 0.0
    %452 = vmatprep.subr.mxu0 0.0
    %453 = vmatpush2.msra.mxu0 0.0
    %454 = vmatprep.subr.mxu0 0.0
    %455 = vmatpush2.msra.mxu0 0.0
    %456 = vmatprep.subr.mxu0 0.0
    %457 = vmatpush2.msra.mxu0 0.0
    %458 = vmatprep.subr.mxu0 0.0
    %459 = vmatpush2.msra.mxu0 0.0
    %460 = vmatprep.subr.mxu0 0.0
    %461 = vmatpush2.msra.mxu0 0.0
    %462 = vmatprep.subr.mxu0 0.0
    %463 = vmatpush2.msra.mxu0 0.0
    %464 = vmatprep.mubr.f32.mxu0 0.0
    %465 = vmatmul.mubr.f32.gmra.mxu0 %v398
    %v466 = vpop.f32.mrf.mxu0
    %v467 = vadd.f32 %v395, %v466
    %v468 = vpop.f32.mrf.mxu0
    %469 = vdwg.mxu0
    %v470 = vxor.u32 %v467, 2147483648
    %v471 = vmul.f32 %v470, 1.442695
    %v472 = vpow.pop %v471
    %v473 = vadd.f32 %v472, 1.0
    %v474 = vrcp.pop %v473
    %v475 = vmul.f32 1.0, %v474
    %v476 = vtanh.pop %v467
    %478 = vrot.lane.b32.xlu0 %v476, 96
    %v479 = vpop.permute.xlu0 %478
    %v481 = vmul.f32 %v475, %v479
    %v482 = vtanh.pop %v481
    %484 = vrot.lane.b32.xlu0 %v482, 64
    %v485 = vpop.permute.xlu0 %484
    %v487 = vmul.f32 %v475, %v485
    %v488 = vld [vmem:[%s3] sm:$0xff]
    %v489 = vld [vmem:[%s3 + $0x8] sm:$0xff]
    %v490 = vld [vmem:[%s3 + $0x10] sm:$0xff]
    %v491 = vld [vmem:[%s3 + $0x18] sm:$0xff]
    %v492 = vlaneseq
    %v493 = vshrl.u32 %v492, 7
    %v494 = vsub.s32 0, %v493
    %v495 = vrot.slane %v385, %v494
    %497 = vrot.lane.b32.xlu0 %v487, 64
    %v498 = vpop.permute.xlu0 %497
    %v499 = vsel %vm396, %v498, 0
    %501 = vmatprep.subr.mxu0 0.0
    %502 = vmatpush1.msra.mxu0 0.0
    %503 = vmatprep.subr.mxu0 0.0
    %504 = vmatpush1.msra.mxu0 0.0
    %505 = vmatprep.subr.mxu0 0.0
    %506 = vmatpush1.msra.mxu0 0.0
    %507 = vmatprep.subr.mxu0 0.0
    %508 = vmatpush1.msra.mxu0 0.0
    %509 = vmatprep.subr.mxu0 0.0
    %510 = vmatpush1.msra.mxu0 0.0
    %511 = vmatprep.subr.mxu0 0.0
    %512 = vmatpush1.msra.mxu0 0.0
    %513 = vmatprep.subr.mxu0 0.0
    %514 = vmatpush1.msra.mxu0 0.0
    %515 = vmatprep.subr.mxu0 0.0
    %516 = vmatpush1.msra.mxu0 0.0
    %517 = vmatprep.subr.mxu0 0.0
    %518 = vmatpush1.msra.mxu0 0.0
    %519 = vmatprep.subr.mxu0 0.0
    %520 = vmatpush1.msra.mxu0 0.0
    %521 = vmatprep.subr.mxu0 0.0
    %522 = vmatpush1.msra.mxu0 0.0
    %523 = vmatprep.subr.mxu0 0.0
    %524 = vmatpush1.msra.mxu0 0.0
    %525 = vmatprep.subr.mxu0 0.0
    %526 = vmatpush1.msra.mxu0 %v491
    %527 = vmatprep.subr.mxu0 0.0
    %528 = vmatpush1.msra.mxu0 %v490
    %529 = vmatprep.subr.mxu0 0.0
    %530 = vmatpush1.msra.mxu0 %v489
    %531 = vmatprep.subr.mxu0 0.0
    %532 = vmatpush1.msra.mxu0 %v488
    %533 = vmatprep.subr.mxu0 0.0
    %534 = vmatpush2.msra.mxu0 0.0
    %535 = vmatprep.subr.mxu0 0.0
    %536 = vmatpush2.msra.mxu0 0.0
    %537 = vmatprep.subr.mxu0 0.0
    %538 = vmatpush2.msra.mxu0 0.0
    %539 = vmatprep.subr.mxu0 0.0
    %540 = vmatpush2.msra.mxu0 0.0
    %541 = vmatprep.subr.mxu0 0.0
    %542 = vmatpush2.msra.mxu0 0.0
    %543 = vmatprep.subr.mxu0 0.0
    %544 = vmatpush2.msra.mxu0 0.0
    %545 = vmatprep.subr.mxu0 0.0
    %546 = vmatpush2.msra.mxu0 0.0
    %547 = vmatprep.subr.mxu0 0.0
    %548 = vmatpush2.msra.mxu0 0.0
    %549 = vmatprep.subr.mxu0 0.0
    %550 = vmatpush2.msra.mxu0 0.0
    %551 = vmatprep.subr.mxu0 0.0
    %552 = vmatpush2.msra.mxu0 0.0
    %553 = vmatprep.subr.mxu0 0.0
    %554 = vmatpush2.msra.mxu0 0.0
    %555 = vmatprep.subr.mxu0 0.0
    %556 = vmatpush2.msra.mxu0 0.0
    %557 = vmatprep.subr.mxu0 0.0
    %558 = vmatpush2.msra.mxu0 0.0
    %559 = vmatprep.subr.mxu0 0.0
    %560 = vmatpush2.msra.mxu0 0.0
    %561 = vmatprep.subr.mxu0 0.0
    %562 = vmatpush2.msra.mxu0 0.0
    %563 = vmatprep.subr.mxu0 0.0
    %564 = vmatpush2.msra.mxu0 0.0
    %565 = vmatprep.mubr.f32.mxu0 0.0
    %566 = vmatmul.mubr.f32.gmra.mxu0 %v499
    %v567 = vpop.f32.mrf.mxu0
    %v568 = vadd.f32 %v495, %v567
    %v569 = vpop.f32.mrf.mxu0
    %570 = vdwg.mxu0
    %v571 = vxor.u32 %v568, 2147483648
    %v572 = vmul.f32 %v571, 1.442695
    %v573 = vpow.pop %v572
    %v574 = vadd.f32 %v573, 1.0
    %v575 = vrcp.pop %v574
    %v576 = vmul.f32 1.0, %v575
    %v577 = vtanh.pop %v568
    %579 = vrot.lane.b32.xlu0 %v577, 96
    %v580 = vpop.permute.xlu0 %579
    %v582 = vmul.f32 %v576, %v580
    %v583 = vtanh.pop %v582
    %585 = vrot.lane.b32.xlu0 %v583, 64
    %v586 = vpop.permute.xlu0 %585
    %v588 = vmul.f32 %v576, %v586
    %v589 = vld [vmem:[#allocation5] sm:$0xff]
    %v590 = vld [vmem:[#allocation5 + $0x8] sm:$0xff]
    %v591 = vld [vmem:[#allocation5 + $0x10] sm:$0xff]
    %v592 = vld [vmem:[#allocation5 + $0x18] sm:$0xff]
    %v593 = vlaneseq
    %v594 = vshrl.u32 %v593, 7
    %v595 = vsub.s32 0, %v594
    %v596 = vrot.slane %v386, %v595
    %598 = vrot.lane.b32.xlu0 %v588, 64
    %v599 = vpop.permute.xlu0 %598
    %v600 = vsel %vm396, %v599, 0
    %602 = vmatprep.subr.mxu0 0.0
    %603 = vmatpush1.msra.mxu0 0.0
    %604 = vmatprep.subr.mxu0 0.0
    %605 = vmatpush1.msra.mxu0 0.0
    %606 = vmatprep.subr.mxu0 0.0
    %607 = vmatpush1.msra.mxu0 0.0
    %608 = vmatprep.subr.mxu0 0.0
    %609 = vmatpush1.msra.mxu0 0.0
    %610 = vmatprep.subr.mxu0 0.0
    %611 = vmatpush1.msra.mxu0 0.0
    %612 = vmatprep.subr.mxu0 0.0
    %613 = vmatpush1.msra.mxu0 0.0
    %614 = vmatprep.subr.mxu0 0.0
    %615 = vmatpush1.msra.mxu0 0.0
    %616 = vmatprep.subr.mxu0 0.0
    %617 = vmatpush1.msra.mxu0 0.0
    %618 = vmatprep.subr.mxu0 0.0
    %619 = vmatpush1.msra.mxu0 0.0
    %620 = vmatprep.subr.mxu0 0.0
    %621 = vmatpush1.msra.mxu0 0.0
    %622 = vmatprep.subr.mxu0 0.0
    %623 = vmatpush1.msra.mxu0 0.0
    %624 = vmatprep.subr.mxu0 0.0
    %625 = vmatpush1.msra.mxu0 0.0
    %626 = vmatprep.subr.mxu0 0.0
    %627 = vmatpush1.msra.mxu0 %v592
    %628 = vmatprep.subr.mxu0 0.0
    %629 = vmatpush1.msra.mxu0 %v591
    %630 = vmatprep.subr.mxu0 0.0
    %631 = vmatpush1.msra.mxu0 %v590
    %632 = vmatprep.subr.mxu0 0.0
    %633 = vmatpush1.msra.mxu0 %v589
    %634 = vmatprep.subr.mxu0 0.0
    %635 = vmatpush2.msra.mxu0 0.0
    %636 = vmatprep.subr.mxu0 0.0
    %637 = vmatpush2.msra.mxu0 0.0
    %638 = vmatprep.subr.mxu0 0.0
    %639 = vmatpush2.msra.mxu0 0.0
    %640 = vmatprep.subr.mxu0 0.0
    %641 = vmatpush2.msra.mxu0 0.0
    %642 = vmatprep.subr.mxu0 0.0
    %643 = vmatpush2.msra.mxu0 0.0
    %644 = vmatprep.subr.mxu0 0.0
    %645 = vmatpush2.msra.mxu0 0.0
    %646 = vmatprep.subr.mxu0 0.0
    %647 = vmatpush2.msra.mxu0 0.0
    %648 = vmatprep.subr.mxu0 0.0
    %649 = vmatpush2.msra.mxu0 0.0
    %650 = vmatprep.subr.mxu0 0.0
    %651 = vmatpush2.msra.mxu0 0.0
    %652 = vmatprep.subr.mxu0 0.0
    %653 = vmatpush2.msra.mxu0 0.0
    %654 = vmatprep.subr.mxu0 0.0
    %655 = vmatpush2.msra.mxu0 0.0
    %656 = vmatprep.subr.mxu0 0.0
    %657 = vmatpush2.msra.mxu0 0.0
    %658 = vmatprep.subr.mxu0 0.0
    %659 = vmatpush2.msra.mxu0 0.0
    %660 = vmatprep.subr.mxu0 0.0
    %661 = vmatpush2.msra.mxu0 0.0
    %662 = vmatprep.subr.mxu0 0.0
    %663 = vmatpush2.msra.mxu0 0.0
    %664 = vmatprep.subr.mxu0 0.0
    %665 = vmatpush2.msra.mxu0 0.0
    %666 = vmatprep.mubr.f32.mxu0 0.0
    %667 = vmatmul.mubr.f32.gmra.mxu0 %v600
    %v668 = vpop.f32.mrf.mxu0
    %v669 = vadd.f32 %v596, %v668
    %v670 = vpop.f32.mrf.mxu0
    %671 = vdwg.mxu0
    %v672 = vmax.f32 %v669, 0.0
    %v673 = vld [vmem:[#allocation8] sm:$0xff]
    %v674 = vld [vmem:[#allocation8 + $0x8] sm:$0xff]
    %v675 = vld [vmem:[#allocation8 + $0x10] sm:$0xff]
    %v676 = vld [vmem:[#allocation8 + $0x18] sm:$0xff]
    %v677 = vld [vmem:[#allocation8 + $0x20] sm:$0xff]
    %v678 = vld [vmem:[#allocation8 + $0x28] sm:$0xff]
    %v679 = vld [vmem:[#allocation8 + $0x30] sm:$0xff]
    %v680 = vld [vmem:[#allocation8 + $0x38] sm:$0xff]
    %v681 = vld [vmem:[#allocation8 + $0x40] sm:$0xff]
    %v682 = vld [vmem:[#allocation8 + $0x48] sm:$0xff]
    %v683 = vld [vmem:[#allocation8 + $0x50] sm:$0xff]
    %v684 = vld [vmem:[#allocation8 + $0x58] sm:$0xff]
    %v685 = vld [vmem:[#allocation8 + $0x60] sm:$0xff]
    %v686 = vld [vmem:[#allocation8 + $0x68] sm:$0xff]
    %v687 = vld [vmem:[#allocation8 + $0x70] sm:$0xff]
    %v688 = vld [vmem:[#allocation8 + $0x78] sm:$0xff]
    %v689 = vlaneseq
    %v690 = vshrl.u32 %v689, 7
    %v691 = vsub.s32 0, %v690
    %v692 = vrot.slane %v387, %v691
    %693 = vmatprep.subr.mxu0 0.0
    %694 = vmatpush1.msra.mxu0 %v688
    %695 = vmatprep.subr.mxu0 0.0
    %696 = vmatpush1.msra.mxu0 %v687
    %697 = vmatprep.subr.mxu0 0.0
    %698 = vmatpush1.msra.mxu0 %v686
    %699 = vmatprep.subr.mxu0 0.0
    %700 = vmatpush1.msra.mxu0 %v685
    %701 = vmatprep.subr.mxu0 0.0
    %702 = vmatpush1.msra.mxu0 %v684
    %703 = vmatprep.subr.mxu0 0.0
    %704 = vmatpush1.msra.mxu0 %v683
    %705 = vmatprep.subr.mxu0 0.0
    %706 = vmatpush1.msra.mxu0 %v682
    %707 = vmatprep.subr.mxu0 0.0
    %708 = vmatpush1.msra.mxu0 %v681
    %709 = vmatprep.subr.mxu0 0.0
    %710 = vmatpush1.msra.mxu0 %v680
    %711 = vmatprep.subr.mxu0 0.0
    %712 = vmatpush1.msra.mxu0 %v679
    %713 = vmatprep.subr.mxu0 0.0
    %714 = vmatpush1.msra.mxu0 %v678
    %715 = vmatprep.subr.mxu0 0.0
    %716 = vmatpush1.msra.mxu0 %v677
    %717 = vmatprep.subr.mxu0 0.0
    %718 = vmatpush1.msra.mxu0 %v676
    %719 = vmatprep.subr.mxu0 0.0
    %720 = vmatpush1.msra.mxu0 %v675
    %721 = vmatprep.subr.mxu0 0.0
    %722 = vmatpush1.msra.mxu0 %v674
    %723 = vmatprep.subr.mxu0 0.0
    %724 = vmatpush1.msra.mxu0 %v673
    %725 = vmatprep.subr.mxu0 0.0
    %726 = vmatpush2.msra.mxu0 0.0
    %727 = vmatprep.subr.mxu0 0.0
    %728 = vmatpush2.msra.mxu0 0.0
    %729 = vmatprep.subr.mxu0 0.0
    %730 = vmatpush2.msra.mxu0 0.0
    %731 = vmatprep.subr.mxu0 0.0
    %732 = vmatpush2.msra.mxu0 0.0
    %733 = vmatprep.subr.mxu0 0.0
    %734 = vmatpush2.msra.mxu0 0.0
    %735 = vmatprep.subr.mxu0 0.0
    %736 = vmatpush2.msra.mxu0 0.0
    %737 = vmatprep.subr.mxu0 0.0
    %738 = vmatpush2.msra.mxu0 0.0
    %739 = vmatprep.subr.mxu0 0.0
    %740 = vmatpush2.msra.mxu0 0.0
    %741 = vmatprep.subr.mxu0 0.0
    %742 = vmatpush2.msra.mxu0 0.0
    %743 = vmatprep.subr.mxu0 0.0
    %744 = vmatpush2.msra.mxu0 0.0
    %745 = vmatprep.subr.mxu0 0.0
    %746 = vmatpush2.msra.mxu0 0.0
    %747 = vmatprep.subr.mxu0 0.0
    %748 = vmatpush2.msra.mxu0 0.0
    %749 = vmatprep.subr.mxu0 0.0
    %750 = vmatpush2.msra.mxu0 0.0
    %751 = vmatprep.subr.mxu0 0.0
    %752 = vmatpush2.msra.mxu0 0.0
    %753 = vmatprep.subr.mxu0 0.0
    %754 = vmatpush2.msra.mxu0 0.0
    %755 = vmatprep.subr.mxu0 0.0
    %756 = vmatpush2.msra.mxu0 0.0
    %757 = vmatprep.mubr.f32.mxu0 0.0
    %758 = vmatmul.mubr.f32.gmra.mxu0 %v672
    %v759 = vpop.f32.mrf.mxu0
    %v760 = vadd.f32 %v692, %v759
    %v761 = vpop.f32.mrf.mxu0
    %762 = vdwg.mxu0
    %v763 = vmax.f32 %v760, 0.0
    %v764 = vlaneseq
    %v765 = vand.u32 %v764, 127
    %vm766 = vcmp.lt.s32.totalorder %v765, 8
    %v767 = vsel %vm766, %v763, -1e+30
    %768 = vmax.xlane.f32.xlu0 %v767
    %v769 = vpop.xlane.xlu0 %768
    %v770 = vsub.f32 %v767, %v769
    %v771 = vmul.f32 %v770, 1.442695
    %v772 = vpow.pop %v771
    %773 = vadd.xlane.f32.xlu0 %v772
    %v774 = vpop.xlane.xlu0 %773
    %v775 = vlog2.pop %v774
    %v776 = vmul.f32 %v775, 0.6931472
    %v777 = vsub.f32 %v770, %v776
    %778 = vst [vmem:[#allocation10] sm:$0xff] %v777
    // Predicated region
    $region34: #{example_net_forward.1} parent=1 // pred_check
      _
    $region35: #{example_net_forward.1} parent=1 // pred_check_branch
      %780 = sbr.rel (0) target = $region37
    $region36: #{example_net_forward.1} parent=1 // pred_region
      %s782 = ssub.s32 128, 128
      %783 = vsyncadd [#allocation7], %s782
      %s785 = sshll.u32 [#allocation10], 4
      %s786 = int_to_ptr.vmem [resolvable:$true] %s785
      %788 = dma.vmem_to_hbm [thread:$0]  %s786, 128, %s7, [#allocation7]
    $region37: #{example_net_forward.1} parent=1 // pred_fallthru
      _
    // Predicated region
    $region38: #{example_net_forward.1} parent=1 // pred_check
      _
    $region39: #{example_net_forward.1} parent=1 // pred_check_branch
      %790 = sbr.rel (0) target = $region41
    $region40: #{example_net_forward.1} parent=1 // pred_region
      %791 = dma.done [#allocation7], 128
    $region41: #{example_net_forward.1} parent=1 // pred_fallthru
      _
    %792 = vsyncpa [#allocation6], 1
    %793 = vsyncpa [#allocation9], 1
    %794 = vsyncpa [#allocation7], 1

</llo_original>
